<compile_context>
chip_gen: v7x
topology: tpu7x:2x2x1
jax: 0.10.0
libtpu: 0.0.40
codegen_flags: <defaults>
</compile_context>

<pallas_src>
import functools

import jax
import jax.numpy as jnp
from jax.experimental import pallas as pl
from jax.experimental.pallas import tpu as pltpu


def _mora_kernel(xp_ref, v_ref, zt_ref, *, r, k):
    # xp_ref : (1, ts, D)     activations with features permuted to (r, k) order
    # v_ref  : (r*r, k)       folded RoPE + 1x1-conv weight, row o*r+i = W_eff[:, i, o]
    # zt_ref : (1, r, ts, k)  output planes: zt[0, o, s, kk] = z[s, kk, o]
    x = xp_ref[0].astype(jnp.float32)                       # (ts, D)
    v = v_ref[...].astype(jnp.float32)                      # (r*r, k)
    xs = [x[:, i * k:(i + 1) * k] for i in range(r)]        # r lane slices, (ts, k) each
    for o in range(r):
        acc = xs[0] * v[o * r:o * r + 1, :]
        for i in range(1, r):
            acc = acc + xs[i] * v[o * r + i:o * r + i + 1, :]
        zt_ref[0, o] = acc.astype(zt_ref.dtype)


def _base_add_kernel(xp_ref, w_ref, b_ref, mora_ref, o_ref):
    # out = xp @ (merged base+LoRA weight) + bias + mora   (all fused, f32 accumulation)
    acc = jnp.dot(xp_ref[...], w_ref[...], preferred_element_type=jnp.float32)
    acc = acc + b_ref[...].astype(jnp.float32) + mora_ref[...].astype(jnp.float32)
    o_ref[...] = acc.astype(o_ref.dtype)


def _largest_divisor_leq(n, target):
    for c in range(min(n, target), 0, -1):
        if n % c == 0 and (c % 8 == 0 or c == n):
            return c
    return n


@functools.partial(
    jax.jit,
    static_argnames=("lora_rank", "alpha", "mora_rank", "tile_m", "tile_s", "tile_n"))
def vector_molora_forward(x, params, *, lora_rank, alpha, mora_rank,
                          tile_m=256, tile_s=256, tile_n=None):
    """Pallas implementation of Vector_MoLoRA.forward (inference; dropout=identity)."""
    B, S, D = x.shape
    r = mora_rank
    # TODO(synk): the in_features % mora_rank != 0 padding branch and the out_features
    #             repeat branch of the PyTorch module are not implemented (the model uses
    #             a square base_layer with D % mora_rank == 0).
    assert D % r == 0
    k = D // r
    M = B * S
    scaling = alpha / lora_rank
    dtype = x.dtype

    Wb, bb = params["Wb"], params["bb"]          # base_layer weight (D, D), bias (D,)
    Cw, Dw = params["Cw"], params["Dw"]          # lora_C (lora_r, D), lora_D (D, lora_r)
    Wa = params["Wa"]                            # mora_A conv1d weight (r, r), kernel_size=1

    # ---- setup: weight-sized tensors only, negligible cost -------------------------------
    # Merge LoRA into the base weight (exact at inference since dropout is identity).
    wmT = (Wb.T.astype(jnp.float32)
           + scaling * (Cw.T.astype(jnp.float32) @ Dw.T.astype(jnp.float32)))   # (D, D)

    # Fold RoPE (cos / sin / rotate_half) and the 1x1 conv into one per-group weight:
    #   z[s, kk, o] = sum_i x[s, kk*r + i] * W_eff[kk, i, o]
    inv_freq = 1.0 / (10000.0 ** (jnp.arange(0, r, 2, dtype=jnp.float32) / r))
    t = jnp.arange(k, dtype=jnp.float32)
    freqs = jnp.outer(t, inv_freq)                                   # (k, r//2)
    emb = jnp.concatenate([freqs, freqs], axis=-1)                   # (k, r)
    cos, sin = jnp.cos(emb), jnp.sin(emb)
    waf = Wa.astype(jnp.float32)
    wa_shift = jnp.roll(waf, -(r // 2), axis=1)                      # Wa[o, (i + r/2) % r]
    sin_shift = jnp.roll(sin, -(r // 2), axis=1)                     # sin[kk, (i + r/2) % r]
    sign = jnp.where(jnp.arange(r) < r // 2, 1.0, -1.0)              # rotate_half sign, folded
    w_eff = (jnp.einsum('ki,oi->kio', cos, waf)
             + jnp.einsum('ki,oi->kio', sin_shift * sign[None, :], wa_shift))    # (k, r, r)
    vtab = jnp.transpose(w_eff, (2, 1, 0)).reshape(r * r, k).astype(dtype)       # row o*r+i

    # Feature permutation (k, r) -> (r, k) within each row: turns the block-diagonal MoRA
    # matmul into k-wide lane-slice FMAs and lets kernel 1 emit its output directly in the
    # memory layout of the module's conv_out.view(...) reinterpretation.
    xp = x.reshape(B, S, k, r).transpose(0, 1, 3, 2).reshape(B, S, D)
    perm = jnp.arange(D).reshape(k, r).T.reshape(-1)                 # permuted pos -> natural pos
    wmT_p = wmT[perm, :].astype(dtype)                               # rows follow xp feature order
    bias = bb.reshape(1, D).astype(dtype)

    # ---- kernel 1: MoRA planes  zt[b, o, s, kk] = z[b, s, kk, o] --------------------------
    ts = _largest_divisor_leq(S, tile_s)
    grid1 = (B, S // ts)
    zt = pl.pallas_call(
        functools.partial(_mora_kernel, r=r, k=k),
        out_shape=jax.ShapeDtypeStruct((B, r, S, k), dtype),
        grid=grid1,
        in_specs=[pl.BlockSpec((1, ts, D), lambda b, t: (b, t, 0)),
                  pl.BlockSpec((r * r, k), lambda b, t: (0, 0))],
        out_specs=pl.BlockSpec((1, r, ts, k), lambda b, t: (b, 0, t, 0)),
        compiler_params=pltpu.CompilerParams(
            dimension_semantics=("parallel", "parallel"),
            vmem_limit_bytes=64 * 1024 * 1024),
    )(xp, vtab)

    # conv_out.view(b, c, h, w): zt's row-major memory IS the (M, D) mora tensor -> free reshape.
    mora = zt.reshape(M, D)

    # ---- kernel 2: merged base+LoRA matmul fused with the MoRA add ------------------------
    xp2 = xp.reshape(M, D)
    tm = min(tile_m, ((M + 7) // 8) * 8)
    m_pad = ((M + tm - 1) // tm) * tm
    if m_pad != M:
        xp2 = jnp.pad(xp2, ((0, m_pad - M), (0, 0)))
        mora = jnp.pad(mora, ((0, m_pad - M), (0, 0)))
    tn = D if tile_n is None else tile_n                 # N tiling for v7x VMEM budgets
    assert D % tn == 0 and (tn % 128 == 0 or tn == D)
    grid2 = (m_pad // tm, D // tn)

    out = pl.pallas_call(
        _base_add_kernel,
        out_shape=jax.ShapeDtypeStruct((m_pad, D), dtype),
        grid=grid2,
        in_specs=[pl.BlockSpec((tm, D), lambda i, n: (i, 0)),
                  pl.BlockSpec((D, tn), lambda i, n: (0, n)),
                  pl.BlockSpec((1, tn), lambda i, n: (0, n)),
                  pl.BlockSpec((tm, tn), lambda i, n: (i, n))],
        out_specs=pl.BlockSpec((tm, tn), lambda i, n: (i, n)),
        compiler_params=pltpu.CompilerParams(
            dimension_semantics=("parallel", "parallel"),
            vmem_limit_bytes=64 * 1024 * 1024),
    )(xp2, wmT_p, bias, mora)

    return out[:M].reshape(B, S, D)


def vector_molora_reference(x, params, *, lora_rank, alpha, mora_rank):
    """Pure-JAX mirror of the PyTorch forward (eval mode) for verification."""
    Wb, bb, Cw, Dw, Wa = (params["Wb"], params["bb"], params["Cw"],
                          params["Dw"], params["Wa"])
    scaling = alpha / lora_rank
    B, S, D = x.shape
    r = mora_rank
    k = D // r
    result = x @ Wb.T + bb
    lora = (x @ Cw.T) @ Dw.T
    in_x = x.reshape(B, S, k, r)
    inv_freq = 1.0 / (10000.0 ** (jnp.arange(0, r, 2, dtype=jnp.float32) / r))
    t = jnp.arange(k, dtype=jnp.float32)
    freqs = jnp.outer(t, inv_freq)
    emb = jnp.concatenate([freqs, freqs], axis=-1)
    cos = jnp.cos(emb)[None]                      # (1, k, r)
    sin = jnp.sin(emb)[None]
    rh = jnp.concatenate([-in_x[..., r // 2:], in_x[..., :r // 2]], axis=-1)
    y = in_x * cos + rh * sin
    in2 = y.reshape(B, S * k, r).transpose(0, 2, 1)            # (B, r, S*k)
    conv = jnp.einsum('oi,bil->bol', Wa, in2)                  # Conv1d, kernel_size=1
    mora = conv.reshape(B, S, k, r).reshape(B, S, D)[..., :D]
    return result + mora + scaling * lora


if __name__ == "__main__":
    B, S, D = 2, 16, 256
    lora_rank, alpha, mora_rank = 4, 8.0, 8        # dropout (p=0.1) is identity at inference

    key = jax.random.PRNGKey(0)
    kx, kwb, kbb, kc, kd, ka = jax.random.split(key, 6)
    x = jax.random.normal(kx, (B, S, D), jnp.float32)
    # NOTE: torch's __init__ zero-inits mora_A / lora_D; use small random values instead so
    # both adapter paths are actually exercised by the check.
    params = dict(
        Wb=jax.random.normal(kwb, (D, D), jnp.float32) * 0.05,
        bb=jax.random.normal(kbb, (D,), jnp.float32) * 0.05,
        Cw=jax.random.normal(kc, (lora_rank, D), jnp.float32) * 0.05,
        Dw=jax.random.normal(kd, (D, lora_rank), jnp.float32) * 0.05,
        Wa=jax.random.normal(ka, (mora_rank, mora_rank), jnp.float32) * 0.05,
    )

    out = vector_molora_forward(x, params, lora_rank=lora_rank, alpha=alpha,
                                mora_rank=mora_rank, tile_n=128)
    out = jax.block_until_ready(out)

    ref = vector_molora_reference(x, params, lora_rank=lora_rank, alpha=alpha,
                                  mora_rank=mora_rank)
    assert out.shape == (B, S, D)
    err = float(jnp.max(jnp.abs(out - ref)))
    assert jnp.allclose(out, ref, atol=2e-3, rtol=2e-3), f"max abs err {err}"
    print("KERNEL_OK")
</pallas_src>

<mosaic_0001>
module attributes {stable_mosaic.version = 11 : i64} {
  func.func @_mora_kernel(%arg0: i32, %arg1: i32, %arg2: memref<1x16x256xf32, #tpu.memory_space<vmem>>, %arg3: memref<64x32xf32, #tpu.memory_space<vmem>>, %arg4: memref<1x8x16x32xf32, #tpu.memory_space<vmem>>) attributes {dimension_semantics = [#tpu.dimension_semantics<parallel>, #tpu.dimension_semantics<parallel>], iteration_bounds = array<i64: 2, 1>, scalar_prefetch = 0 : i64, scratch_operands = 0 : i64, tpu.core_type = #tpu.core_type<tc>, window_params = [{transform_indices = @transform_0, window_bounds = array<i64: 1, 16, 256>}, {pipeline_mode = #tpu.pipeline_mode<synchronous>, transform_indices = @transform_1, window_bounds = array<i64: 64, 32>}, {transform_indices = @transform_2, window_bounds = array<i64: 1, 8, 16, 32>}]} {
    %c0 = arith.constant 0 : index
    %c0_0 = arith.constant 0 : index
    %c0_1 = arith.constant 0 : index
    %0 = vector.load %arg2[%c0, %c0_0, %c0_1] : memref<1x16x256xf32, #tpu.memory_space<vmem>>, vector<1x16x256xf32>
    %1 = vector.shape_cast %0 : vector<1x16x256xf32> to vector<16x256xf32>
    %c0_2 = arith.constant 0 : index
    %c0_3 = arith.constant 0 : index
    %2 = vector.load %arg3[%c0_2, %c0_3] : memref<64x32xf32, #tpu.memory_space<vmem>>, vector<64x32xf32>
    %3 = vector.extract_strided_slice %1 {offsets = [0, 0], sizes = [16, 32], strides = [1, 1]} : vector<16x256xf32> to vector<16x32xf32>
    %4 = vector.extract_strided_slice %1 {offsets = [0, 32], sizes = [16, 32], strides = [1, 1]} : vector<16x256xf32> to vector<16x32xf32>
    %5 = vector.extract_strided_slice %1 {offsets = [0, 64], sizes = [16, 32], strides = [1, 1]} : vector<16x256xf32> to vector<16x32xf32>
    %6 = vector.extract_strided_slice %1 {offsets = [0, 96], sizes = [16, 32], strides = [1, 1]} : vector<16x256xf32> to vector<16x32xf32>
    %7 = vector.extract_strided_slice %1 {offsets = [0, 128], sizes = [16, 32], strides = [1, 1]} : vector<16x256xf32> to vector<16x32xf32>
    %8 = vector.extract_strided_slice %1 {offsets = [0, 160], sizes = [16, 32], strides = [1, 1]} : vector<16x256xf32> to vector<16x32xf32>
    %9 = vector.extract_strided_slice %1 {offsets = [0, 192], sizes = [16, 32], strides = [1, 1]} : vector<16x256xf32> to vector<16x32xf32>
    %10 = vector.extract_strided_slice %1 {offsets = [0, 224], sizes = [16, 32], strides = [1, 1]} : vector<16x256xf32> to vector<16x32xf32>
    %11 = vector.extract_strided_slice %2 {offsets = [0, 0], sizes = [1, 32], strides = [1, 1]} : vector<64x32xf32> to vector<1x32xf32>
    %12 = vector.broadcast %11 : vector<1x32xf32> to vector<16x32xf32>
    %13 = arith.mulf %3, %12 : vector<16x32xf32>
    %14 = vector.extract_strided_slice %2 {offsets = [1, 0], sizes = [1, 32], strides = [1, 1]} : vector<64x32xf32> to vector<1x32xf32>
    %15 = vector.broadcast %14 : vector<1x32xf32> to vector<16x32xf32>
    %16 = arith.mulf %4, %15 : vector<16x32xf32>
    %17 = arith.addf %13, %16 : vector<16x32xf32>
    %18 = vector.extract_strided_slice %2 {offsets = [2, 0], sizes = [1, 32], strides = [1, 1]} : vector<64x32xf32> to vector<1x32xf32>
    %19 = vector.broadcast %18 : vector<1x32xf32> to vector<16x32xf32>
    %20 = arith.mulf %5, %19 : vector<16x32xf32>
    %21 = arith.addf %17, %20 : vector<16x32xf32>
    %22 = vector.extract_strided_slice %2 {offsets = [3, 0], sizes = [1, 32], strides = [1, 1]} : vector<64x32xf32> to vector<1x32xf32>
    %23 = vector.broadcast %22 : vector<1x32xf32> to vector<16x32xf32>
    %24 = arith.mulf %6, %23 : vector<16x32xf32>
    %25 = arith.addf %21, %24 : vector<16x32xf32>
    %26 = vector.extract_strided_slice %2 {offsets = [4, 0], sizes = [1, 32], strides = [1, 1]} : vector<64x32xf32> to vector<1x32xf32>
    %27 = vector.broadcast %26 : vector<1x32xf32> to vector<16x32xf32>
    %28 = arith.mulf %7, %27 : vector<16x32xf32>
    %29 = arith.addf %25, %28 : vector<16x32xf32>
    %30 = vector.extract_strided_slice %2 {offsets = [5, 0], sizes = [1, 32], strides = [1, 1]} : vector<64x32xf32> to vector<1x32xf32>
    %31 = vector.broadcast %30 : vector<1x32xf32> to vector<16x32xf32>
    %32 = arith.mulf %8, %31 : vector<16x32xf32>
    %33 = arith.addf %29, %32 : vector<16x32xf32>
    %34 = vector.extract_strided_slice %2 {offsets = [6, 0], sizes = [1, 32], strides = [1, 1]} : vector<64x32xf32> to vector<1x32xf32>
    %35 = vector.broadcast %34 : vector<1x32xf32> to vector<16x32xf32>
    %36 = arith.mulf %9, %35 : vector<16x32xf32>
    %37 = arith.addf %33, %36 : vector<16x32xf32>
    %38 = vector.extract_strided_slice %2 {offsets = [7, 0], sizes = [1, 32], strides = [1, 1]} : vector<64x32xf32> to vector<1x32xf32>
    %39 = vector.broadcast %38 : vector<1x32xf32> to vector<16x32xf32>
    %40 = arith.mulf %10, %39 : vector<16x32xf32>
    %41 = arith.addf %37, %40 : vector<16x32xf32>
    %c0_4 = arith.constant 0 : index
    %c0_5 = arith.constant 0 : index
    %c0_6 = arith.constant 0 : index
    %c0_7 = arith.constant 0 : index
    %42 = vector.load %arg4[%c0_4, %c0_5, %c0_6, %c0_7] : memref<1x8x16x32xf32, #tpu.memory_space<vmem>>, vector<1x1x16x32xf32>
    %43 = vector.shape_cast %42 : vector<1x1x16x32xf32> to vector<16x32xf32>
    %44 = vector.shape_cast %41 : vector<16x32xf32> to vector<1x1x16x32xf32>
    tpu.vector_store %arg4[%c0_4, %c0_5, %c0_6, %c0_7], %44 {strides = array<i32>} : memref<1x8x16x32xf32, #tpu.memory_space<vmem>>, vector<1x1x16x32xf32>,
    %45 = vector.extract_strided_slice %2 {offsets = [8, 0], sizes = [1, 32], strides = [1, 1]} : vector<64x32xf32> to vector<1x32xf32>
    %46 = vector.broadcast %45 : vector<1x32xf32> to vector<16x32xf32>
    %47 = arith.mulf %3, %46 : vector<16x32xf32>
    %48 = vector.extract_strided_slice %2 {offsets = [9, 0], sizes = [1, 32], strides = [1, 1]} : vector<64x32xf32> to vector<1x32xf32>
    %49 = vector.broadcast %48 : vector<1x32xf32> to vector<16x32xf32>
    %50 = arith.mulf %4, %49 : vector<16x32xf32>
    %51 = arith.addf %47, %50 : vector<16x32xf32>
    %52 = vector.extract_strided_slice %2 {offsets = [10, 0], sizes = [1, 32], strides = [1, 1]} : vector<64x32xf32> to vector<1x32xf32>
    %53 = vector.broadcast %52 : vector<1x32xf32> to vector<16x32xf32>
    %54 = arith.mulf %5, %53 : vector<16x32xf32>
    %55 = arith.addf %51, %54 : vector<16x32xf32>
    %56 = vector.extract_strided_slice %2 {offsets = [11, 0], sizes = [1, 32], strides = [1, 1]} : vector<64x32xf32> to vector<1x32xf32>
    %57 = vector.broadcast %56 : vector<1x32xf32> to vector<16x32xf32>
    %58 = arith.mulf %6, %57 : vector<16x32xf32>
    %59 = arith.addf %55, %58 : vector<16x32xf32>
    %60 = vector.extract_strided_slice %2 {offsets = [12, 0], sizes = [1, 32], strides = [1, 1]} : vector<64x32xf32> to vector<1x32xf32>
    %61 = vector.broadcast %60 : vector<1x32xf32> to vector<16x32xf32>
    %62 = arith.mulf %7, %61 : vector<16x32xf32>
    %63 = arith.addf %59, %62 : vector<16x32xf32>
    %64 = vector.extract_strided_slice %2 {offsets = [13, 0], sizes = [1, 32], strides = [1, 1]} : vector<64x32xf32> to vector<1x32xf32>
    %65 = vector.broadcast %64 : vector<1x32xf32> to vector<16x32xf32>
    %66 = arith.mulf %8, %65 : vector<16x32xf32>
    %67 = arith.addf %63, %66 : vector<16x32xf32>
    %68 = vector.extract_strided_slice %2 {offsets = [14, 0], sizes = [1, 32], strides = [1, 1]} : vector<64x32xf32> to vector<1x32xf32>
    %69 = vector.broadcast %68 : vector<1x32xf32> to vector<16x32xf32>
    %70 = arith.mulf %9, %69 : vector<16x32xf32>
    %71 = arith.addf %67, %70 : vector<16x32xf32>
    %72 = vector.extract_strided_slice %2 {offsets = [15, 0], sizes = [1, 32], strides = [1, 1]} : vector<64x32xf32> to vector<1x32xf32>
    %73 = vector.broadcast %72 : vector<1x32xf32> to vector<16x32xf32>
    %74 = arith.mulf %10, %73 : vector<16x32xf32>
    %75 = arith.addf %71, %74 : vector<16x32xf32>
    %c0_8 = arith.constant 0 : index
    %c1 = arith.constant 1 : index
    %c0_9 = arith.constant 0 : index
    %c0_10 = arith.constant 0 : index
    %76 = vector.load %arg4[%c0_8, %c1, %c0_9, %c0_10] : memref<1x8x16x32xf32, #tpu.memory_space<vmem>>, vector<1x1x16x32xf32>
    %77 = vector.shape_cast %76 : vector<1x1x16x32xf32> to vector<16x32xf32>
    %78 = vector.shape_cast %75 : vector<16x32xf32> to vector<1x1x16x32xf32>
    tpu.vector_store %arg4[%c0_8, %c1, %c0_9, %c0_10], %78 {strides = array<i32>} : memref<1x8x16x32xf32, #tpu.memory_space<vmem>>, vector<1x1x16x32xf32>,
    %79 = vector.extract_strided_slice %2 {offsets = [16, 0], sizes = [1, 32], strides = [1, 1]} : vector<64x32xf32> to vector<1x32xf32>
    %80 = vector.broadcast %79 : vector<1x32xf32> to vector<16x32xf32>
    %81 = arith.mulf %3, %80 : vector<16x32xf32>
    %82 = vector.extract_strided_slice %2 {offsets = [17, 0], sizes = [1, 32], strides = [1, 1]} : vector<64x32xf32> to vector<1x32xf32>
    %83 = vector.broadcast %82 : vector<1x32xf32> to vector<16x32xf32>
    %84 = arith.mulf %4, %83 : vector<16x32xf32>
    %85 = arith.addf %81, %84 : vector<16x32xf32>
    %86 = vector.extract_strided_slice %2 {offsets = [18, 0], sizes = [1, 32], strides = [1, 1]} : vector<64x32xf32> to vector<1x32xf32>
    %87 = vector.broadcast %86 : vector<1x32xf32> to vector<16x32xf32>
    %88 = arith.mulf %5, %87 : vector<16x32xf32>
    %89 = arith.addf %85, %88 : vector<16x32xf32>
    %90 = vector.extract_strided_slice %2 {offsets = [19, 0], sizes = [1, 32], strides = [1, 1]} : vector<64x32xf32> to vector<1x32xf32>
    %91 = vector.broadcast %90 : vector<1x32xf32> to vector<16x32xf32>
    %92 = arith.mulf %6, %91 : vector<16x32xf32>
    %93 = arith.addf %89, %92 : vector<16x32xf32>
    %94 = vector.extract_strided_slice %2 {offsets = [20, 0], sizes = [1, 32], strides = [1, 1]} : vector<64x32xf32> to vector<1x32xf32>
    %95 = vector.broadcast %94 : vector<1x32xf32> to vector<16x32xf32>
    %96 = arith.mulf %7, %95 : vector<16x32xf32>
    %97 = arith.addf %93, %96 : vector<16x32xf32>
    %98 = vector.extract_strided_slice %2 {offsets = [21, 0], sizes = [1, 32], strides = [1, 1]} : vector<64x32xf32> to vector<1x32xf32>
    %99 = vector.broadcast %98 : vector<1x32xf32> to vector<16x32xf32>
    %100 = arith.mulf %8, %99 : vector<16x32xf32>
    %101 = arith.addf %97, %100 : vector<16x32xf32>
    %102 = vector.extract_strided_slice %2 {offsets = [22, 0], sizes = [1, 32], strides = [1, 1]} : vector<64x32xf32> to vector<1x32xf32>
    %103 = vector.broadcast %102 : vector<1x32xf32> to vector<16x32xf32>
    %104 = arith.mulf %9, %103 : vector<16x32xf32>
    %105 = arith.addf %101, %104 : vector<16x32xf32>
    %106 = vector.extract_strided_slice %2 {offsets = [23, 0], sizes = [1, 32], strides = [1, 1]} : vector<64x32xf32> to vector<1x32xf32>
    %107 = vector.broadcast %106 : vector<1x32xf32> to vector<16x32xf32>
    %108 = arith.mulf %10, %107 : vector<16x32xf32>
    %109 = arith.addf %105, %108 : vector<16x32xf32>
    %c0_11 = arith.constant 0 : index
    %c2 = arith.constant 2 : index
    %c0_12 = arith.constant 0 : index
    %c0_13 = arith.constant 0 : index
    %110 = vector.load %arg4[%c0_11, %c2, %c0_12, %c0_13] : memref<1x8x16x32xf32, #tpu.memory_space<vmem>>, vector<1x1x16x32xf32>
    %111 = vector.shape_cast %110 : vector<1x1x16x32xf32> to vector<16x32xf32>
    %112 = vector.shape_cast %109 : vector<16x32xf32> to vector<1x1x16x32xf32>
    tpu.vector_store %arg4[%c0_11, %c2, %c0_12, %c0_13], %112 {strides = array<i32>} : memref<1x8x16x32xf32, #tpu.memory_space<vmem>>, vector<1x1x16x32xf32>,
    %113 = vector.extract_strided_slice %2 {offsets = [24, 0], sizes = [1, 32], strides = [1, 1]} : vector<64x32xf32> to vector<1x32xf32>
    %114 = vector.broadcast %113 : vector<1x32xf32> to vector<16x32xf32>
    %115 = arith.mulf %3, %114 : vector<16x32xf32>
    %116 = vector.extract_strided_slice %2 {offsets = [25, 0], sizes = [1, 32], strides = [1, 1]} : vector<64x32xf32> to vector<1x32xf32>
    %117 = vector.broadcast %116 : vector<1x32xf32> to vector<16x32xf32>
    %118 = arith.mulf %4, %117 : vector<16x32xf32>
    %119 = arith.addf %115, %118 : vector<16x32xf32>
    %120 = vector.extract_strided_slice %2 {offsets = [26, 0], sizes = [1, 32], strides = [1, 1]} : vector<64x32xf32> to vector<1x32xf32>
    %121 = vector.broadcast %120 : vector<1x32xf32> to vector<16x32xf32>
    %122 = arith.mulf %5, %121 : vector<16x32xf32>
    %123 = arith.addf %119, %122 : vector<16x32xf32>
    %124 = vector.extract_strided_slice %2 {offsets = [27, 0], sizes = [1, 32], strides = [1, 1]} : vector<64x32xf32> to vector<1x32xf32>
    %125 = vector.broadcast %124 : vector<1x32xf32> to vector<16x32xf32>
    %126 = arith.mulf %6, %125 : vector<16x32xf32>
    %127 = arith.addf %123, %126 : vector<16x32xf32>
    %128 = vector.extract_strided_slice %2 {offsets = [28, 0], sizes = [1, 32], strides = [1, 1]} : vector<64x32xf32> to vector<1x32xf32>
    %129 = vector.broadcast %128 : vector<1x32xf32> to vector<16x32xf32>
    %130 = arith.mulf %7, %129 : vector<16x32xf32>
    %131 = arith.addf %127, %130 : vector<16x32xf32>
    %132 = vector.extract_strided_slice %2 {offsets = [29, 0], sizes = [1, 32], strides = [1, 1]} : vector<64x32xf32> to vector<1x32xf32>
    %133 = vector.broadcast %132 : vector<1x32xf32> to vector<16x32xf32>
    %134 = arith.mulf %8, %133 : vector<16x32xf32>
    %135 = arith.addf %131, %134 : vector<16x32xf32>
    %136 = vector.extract_strided_slice %2 {offsets = [30, 0], sizes = [1, 32], strides = [1, 1]} : vector<64x32xf32> to vector<1x32xf32>
    %137 = vector.broadcast %136 : vector<1x32xf32> to vector<16x32xf32>
    %138 = arith.mulf %9, %137 : vector<16x32xf32>
    %139 = arith.addf %135, %138 : vector<16x32xf32>
    %140 = vector.extract_strided_slice %2 {offsets = [31, 0], sizes = [1, 32], strides = [1, 1]} : vector<64x32xf32> to vector<1x32xf32>
    %141 = vector.broadcast %140 : vector<1x32xf32> to vector<16x32xf32>
    %142 = arith.mulf %10, %141 : vector<16x32xf32>
    %143 = arith.addf %139, %142 : vector<16x32xf32>
    %c0_14 = arith.constant 0 : index
    %c3 = arith.constant 3 : index
    %c0_15 = arith.constant 0 : index
    %c0_16 = arith.constant 0 : index
    %144 = vector.load %arg4[%c0_14, %c3, %c0_15, %c0_16] : memref<1x8x16x32xf32, #tpu.memory_space<vmem>>, vector<1x1x16x32xf32>
    %145 = vector.shape_cast %144 : vector<1x1x16x32xf32> to vector<16x32xf32>
    %146 = vector.shape_cast %143 : vector<16x32xf32> to vector<1x1x16x32xf32>
    tpu.vector_store %arg4[%c0_14, %c3, %c0_15, %c0_16], %146 {strides = array<i32>} : memref<1x8x16x32xf32, #tpu.memory_space<vmem>>, vector<1x1x16x32xf32>,
    %147 = vector.extract_strided_slice %2 {offsets = [32, 0], sizes = [1, 32], strides = [1, 1]} : vector<64x32xf32> to vector<1x32xf32>
    %148 = vector.broadcast %147 : vector<1x32xf32> to vector<16x32xf32>
    %149 = arith.mulf %3, %148 : vector<16x32xf32>
    %150 = vector.extract_strided_slice %2 {offsets = [33, 0], sizes = [1, 32], strides = [1, 1]} : vector<64x32xf32> to vector<1x32xf32>
    %151 = vector.broadcast %150 : vector<1x32xf32> to vector<16x32xf32>
    %152 = arith.mulf %4, %151 : vector<16x32xf32>
    %153 = arith.addf %149, %152 : vector<16x32xf32>
    %154 = vector.extract_strided_slice %2 {offsets = [34, 0], sizes = [1, 32], strides = [1, 1]} : vector<64x32xf32> to vector<1x32xf32>
    %155 = vector.broadcast %154 : vector<1x32xf32> to vector<16x32xf32>
    %156 = arith.mulf %5, %155 : vector<16x32xf32>
    %157 = arith.addf %153, %156 : vector<16x32xf32>
    %158 = vector.extract_strided_slice %2 {offsets = [35, 0], sizes = [1, 32], strides = [1, 1]} : vector<64x32xf32> to vector<1x32xf32>
    %159 = vector.broadcast %158 : vector<1x32xf32> to vector<16x32xf32>
    %160 = arith.mulf %6, %159 : vector<16x32xf32>
    %161 = arith.addf %157, %160 : vector<16x32xf32>
    %162 = vector.extract_strided_slice %2 {offsets = [36, 0], sizes = [1, 32], strides = [1, 1]} : vector<64x32xf32> to vector<1x32xf32>
    %163 = vector.broadcast %162 : vector<1x32xf32> to vector<16x32xf32>
    %164 = arith.mulf %7, %163 : vector<16x32xf32>
    %165 = arith.addf %161, %164 : vector<16x32xf32>
    %166 = vector.extract_strided_slice %2 {offsets = [37, 0], sizes = [1, 32], strides = [1, 1]} : vector<64x32xf32> to vector<1x32xf32>
    %167 = vector.broadcast %166 : vector<1x32xf32> to vector<16x32xf32>
    %168 = arith.mulf %8, %167 : vector<16x32xf32>
    %169 = arith.addf %165, %168 : vector<16x32xf32>
    %170 = vector.extract_strided_slice %2 {offsets = [38, 0], sizes = [1, 32], strides = [1, 1]} : vector<64x32xf32> to vector<1x32xf32>
    %171 = vector.broadcast %170 : vector<1x32xf32> to vector<16x32xf32>
    %172 = arith.mulf %9, %171 : vector<16x32xf32>
    %173 = arith.addf %169, %172 : vector<16x32xf32>
    %174 = vector.extract_strided_slice %2 {offsets = [39, 0], sizes = [1, 32], strides = [1, 1]} : vector<64x32xf32> to vector<1x32xf32>
    %175 = vector.broadcast %174 : vector<1x32xf32> to vector<16x32xf32>
    %176 = arith.mulf %10, %175 : vector<16x32xf32>
    %177 = arith.addf %173, %176 : vector<16x32xf32>
    %c0_17 = arith.constant 0 : index
    %c4 = arith.constant 4 : index
    %c0_18 = arith.constant 0 : index
    %c0_19 = arith.constant 0 : index
    %178 = vector.load %arg4[%c0_17, %c4, %c0_18, %c0_19] : memref<1x8x16x32xf32, #tpu.memory_space<vmem>>, vector<1x1x16x32xf32>
    %179 = vector.shape_cast %178 : vector<1x1x16x32xf32> to vector<16x32xf32>
    %180 = vector.shape_cast %177 : vector<16x32xf32> to vector<1x1x16x32xf32>
    tpu.vector_store %arg4[%c0_17, %c4, %c0_18, %c0_19], %180 {strides = array<i32>} : memref<1x8x16x32xf32, #tpu.memory_space<vmem>>, vector<1x1x16x32xf32>,
    %181 = vector.extract_strided_slice %2 {offsets = [40, 0], sizes = [1, 32], strides = [1, 1]} : vector<64x32xf32> to vector<1x32xf32>
    %182 = vector.broadcast %181 : vector<1x32xf32> to vector<16x32xf32>
    %183 = arith.mulf %3, %182 : vector<16x32xf32>
    %184 = vector.extract_strided_slice %2 {offsets = [41, 0], sizes = [1, 32], strides = [1, 1]} : vector<64x32xf32> to vector<1x32xf32>
    %185 = vector.broadcast %184 : vector<1x32xf32> to vector<16x32xf32>
    %186 = arith.mulf %4, %185 : vector<16x32xf32>
    %187 = arith.addf %183, %186 : vector<16x32xf32>
    %188 = vector.extract_strided_slice %2 {offsets = [42, 0], sizes = [1, 32], strides = [1, 1]} : vector<64x32xf32> to vector<1x32xf32>
    %189 = vector.broadcast %188 : vector<1x32xf32> to vector<16x32xf32>
    %190 = arith.mulf %5, %189 : vector<16x32xf32>
    %191 = arith.addf %187, %190 : vector<16x32xf32>
    %192 = vector.extract_strided_slice %2 {offsets = [43, 0], sizes = [1, 32], strides = [1, 1]} : vector<64x32xf32> to vector<1x32xf32>
    %193 = vector.broadcast %192 : vector<1x32xf32> to vector<16x32xf32>
    %194 = arith.mulf %6, %193 : vector<16x32xf32>
    %195 = arith.addf %191, %194 : vector<16x32xf32>
    %196 = vector.extract_strided_slice %2 {offsets = [44, 0], sizes = [1, 32], strides = [1, 1]} : vector<64x32xf32> to vector<1x32xf32>
    %197 = vector.broadcast %196 : vector<1x32xf32> to vector<16x32xf32>
    %198 = arith.mulf %7, %197 : vector<16x32xf32>
    %199 = arith.addf %195, %198 : vector<16x32xf32>
    %200 = vector.extract_strided_slice %2 {offsets = [45, 0], sizes = [1, 32], strides = [1, 1]} : vector<64x32xf32> to vector<1x32xf32>
    %201 = vector.broadcast %200 : vector<1x32xf32> to vector<16x32xf32>
    %202 = arith.mulf %8, %201 : vector<16x32xf32>
    %203 = arith.addf %199, %202 : vector<16x32xf32>
    %204 = vector.extract_strided_slice %2 {offsets = [46, 0], sizes = [1, 32], strides = [1, 1]} : vector<64x32xf32> to vector<1x32xf32>
    %205 = vector.broadcast %204 : vector<1x32xf32> to vector<16x32xf32>
    %206 = arith.mulf %9, %205 : vector<16x32xf32>
    %207 = arith.addf %203, %206 : vector<16x32xf32>
    %208 = vector.extract_strided_slice %2 {offsets = [47, 0], sizes = [1, 32], strides = [1, 1]} : vector<64x32xf32> to vector<1x32xf32>
    %209 = vector.broadcast %208 : vector<1x32xf32> to vector<16x32xf32>
    %210 = arith.mulf %10, %209 : vector<16x32xf32>
    %211 = arith.addf %207, %210 : vector<16x32xf32>
    %c0_20 = arith.constant 0 : index
    %c5 = arith.constant 5 : index
    %c0_21 = arith.constant 0 : index
    %c0_22 = arith.constant 0 : index
    %212 = vector.load %arg4[%c0_20, %c5, %c0_21, %c0_22] : memref<1x8x16x32xf32, #tpu.memory_space<vmem>>, vector<1x1x16x32xf32>
    %213 = vector.shape_cast %212 : vector<1x1x16x32xf32> to vector<16x32xf32>
    %214 = vector.shape_cast %211 : vector<16x32xf32> to vector<1x1x16x32xf32>
    tpu.vector_store %arg4[%c0_20, %c5, %c0_21, %c0_22], %214 {strides = array<i32>} : memref<1x8x16x32xf32, #tpu.memory_space<vmem>>, vector<1x1x16x32xf32>,
    %215 = vector.extract_strided_slice %2 {offsets = [48, 0], sizes = [1, 32], strides = [1, 1]} : vector<64x32xf32> to vector<1x32xf32>
    %216 = vector.broadcast %215 : vector<1x32xf32> to vector<16x32xf32>
    %217 = arith.mulf %3, %216 : vector<16x32xf32>
    %218 = vector.extract_strided_slice %2 {offsets = [49, 0], sizes = [1, 32], strides = [1, 1]} : vector<64x32xf32> to vector<1x32xf32>
    %219 = vector.broadcast %218 : vector<1x32xf32> to vector<16x32xf32>
    %220 = arith.mulf %4, %219 : vector<16x32xf32>
    %221 = arith.addf %217, %220 : vector<16x32xf32>
    %222 = vector.extract_strided_slice %2 {offsets = [50, 0], sizes = [1, 32], strides = [1, 1]} : vector<64x32xf32> to vector<1x32xf32>
    %223 = vector.broadcast %222 : vector<1x32xf32> to vector<16x32xf32>
    %224 = arith.mulf %5, %223 : vector<16x32xf32>
    %225 = arith.addf %221, %224 : vector<16x32xf32>
    %226 = vector.extract_strided_slice %2 {offsets = [51, 0], sizes = [1, 32], strides = [1, 1]} : vector<64x32xf32> to vector<1x32xf32>
    %227 = vector.broadcast %226 : vector<1x32xf32> to vector<16x32xf32>
    %228 = arith.mulf %6, %227 : vector<16x32xf32>
    %229 = arith.addf %225, %228 : vector<16x32xf32>
    %230 = vector.extract_strided_slice %2 {offsets = [52, 0], sizes = [1, 32], strides = [1, 1]} : vector<64x32xf32> to vector<1x32xf32>
    %231 = vector.broadcast %230 : vector<1x32xf32> to vector<16x32xf32>
    %232 = arith.mulf %7, %231 : vector<16x32xf32>
    %233 = arith.addf %229, %232 : vector<16x32xf32>
    %234 = vector.extract_strided_slice %2 {offsets = [53, 0], sizes = [1, 32], strides = [1, 1]} : vector<64x32xf32> to vector<1x32xf32>
    %235 = vector.broadcast %234 : vector<1x32xf32> to vector<16x32xf32>
    %236 = arith.mulf %8, %235 : vector<16x32xf32>
    %237 = arith.addf %233, %236 : vector<16x32xf32>
    %238 = vector.extract_strided_slice %2 {offsets = [54, 0], sizes = [1, 32], strides = [1, 1]} : vector<64x32xf32> to vector<1x32xf32>
    %239 = vector.broadcast %238 : vector<1x32xf32> to vector<16x32xf32>
    %240 = arith.mulf %9, %239 : vector<16x32xf32>
    %241 = arith.addf %237, %240 : vector<16x32xf32>
    %242 = vector.extract_strided_slice %2 {offsets = [55, 0], sizes = [1, 32], strides = [1, 1]} : vector<64x32xf32> to vector<1x32xf32>
    %243 = vector.broadcast %242 : vector<1x32xf32> to vector<16x32xf32>
    %244 = arith.mulf %10, %243 : vector<16x32xf32>
    %245 = arith.addf %241, %244 : vector<16x32xf32>
    %c0_23 = arith.constant 0 : index
    %c6 = arith.constant 6 : index
    %c0_24 = arith.constant 0 : index
    %c0_25 = arith.constant 0 : index
    %246 = vector.load %arg4[%c0_23, %c6, %c0_24, %c0_25] : memref<1x8x16x32xf32, #tpu.memory_space<vmem>>, vector<1x1x16x32xf32>
    %247 = vector.shape_cast %246 : vector<1x1x16x32xf32> to vector<16x32xf32>
    %248 = vector.shape_cast %245 : vector<16x32xf32> to vector<1x1x16x32xf32>
    tpu.vector_store %arg4[%c0_23, %c6, %c0_24, %c0_25], %248 {strides = array<i32>} : memref<1x8x16x32xf32, #tpu.memory_space<vmem>>, vector<1x1x16x32xf32>,
    %249 = vector.extract_strided_slice %2 {offsets = [56, 0], sizes = [1, 32], strides = [1, 1]} : vector<64x32xf32> to vector<1x32xf32>
    %250 = vector.broadcast %249 : vector<1x32xf32> to vector<16x32xf32>
    %251 = arith.mulf %3, %250 : vector<16x32xf32>
    %252 = vector.extract_strided_slice %2 {offsets = [57, 0], sizes = [1, 32], strides = [1, 1]} : vector<64x32xf32> to vector<1x32xf32>
    %253 = vector.broadcast %252 : vector<1x32xf32> to vector<16x32xf32>
    %254 = arith.mulf %4, %253 : vector<16x32xf32>
    %255 = arith.addf %251, %254 : vector<16x32xf32>
    %256 = vector.extract_strided_slice %2 {offsets = [58, 0], sizes = [1, 32], strides = [1, 1]} : vector<64x32xf32> to vector<1x32xf32>
    %257 = vector.broadcast %256 : vector<1x32xf32> to vector<16x32xf32>
    %258 = arith.mulf %5, %257 : vector<16x32xf32>
    %259 = arith.addf %255, %258 : vector<16x32xf32>
    %260 = vector.extract_strided_slice %2 {offsets = [59, 0], sizes = [1, 32], strides = [1, 1]} : vector<64x32xf32> to vector<1x32xf32>
    %261 = vector.broadcast %260 : vector<1x32xf32> to vector<16x32xf32>
    %262 = arith.mulf %6, %261 : vector<16x32xf32>
    %263 = arith.addf %259, %262 : vector<16x32xf32>
    %264 = vector.extract_strided_slice %2 {offsets = [60, 0], sizes = [1, 32], strides = [1, 1]} : vector<64x32xf32> to vector<1x32xf32>
    %265 = vector.broadcast %264 : vector<1x32xf32> to vector<16x32xf32>
    %266 = arith.mulf %7, %265 : vector<16x32xf32>
    %267 = arith.addf %263, %266 : vector<16x32xf32>
    %268 = vector.extract_strided_slice %2 {offsets = [61, 0], sizes = [1, 32], strides = [1, 1]} : vector<64x32xf32> to vector<1x32xf32>
    %269 = vector.broadcast %268 : vector<1x32xf32> to vector<16x32xf32>
    %270 = arith.mulf %8, %269 : vector<16x32xf32>
    %271 = arith.addf %267, %270 : vector<16x32xf32>
    %272 = vector.extract_strided_slice %2 {offsets = [62, 0], sizes = [1, 32], strides = [1, 1]} : vector<64x32xf32> to vector<1x32xf32>
    %273 = vector.broadcast %272 : vector<1x32xf32> to vector<16x32xf32>
    %274 = arith.mulf %9, %273 : vector<16x32xf32>
    %275 = arith.addf %271, %274 : vector<16x32xf32>
    %276 = vector.extract_strided_slice %2 {offsets = [63, 0], sizes = [1, 32], strides = [1, 1]} : vector<64x32xf32> to vector<1x32xf32>
    %277 = vector.broadcast %276 : vector<1x32xf32> to vector<16x32xf32>
    %278 = arith.mulf %10, %277 : vector<16x32xf32>
    %279 = arith.addf %275, %278 : vector<16x32xf32>
    %c0_26 = arith.constant 0 : index
    %c7 = arith.constant 7 : index
    %c0_27 = arith.constant 0 : index
    %c0_28 = arith.constant 0 : index
    %280 = vector.load %arg4[%c0_26, %c7, %c0_27, %c0_28] : memref<1x8x16x32xf32, #tpu.memory_space<vmem>>, vector<1x1x16x32xf32>
    %281 = vector.shape_cast %280 : vector<1x1x16x32xf32> to vector<16x32xf32>
    %282 = vector.shape_cast %279 : vector<16x32xf32> to vector<1x1x16x32xf32>
    tpu.vector_store %arg4[%c0_26, %c7, %c0_27, %c0_28], %282 {strides = array<i32>} : memref<1x8x16x32xf32, #tpu.memory_space<vmem>>, vector<1x1x16x32xf32>,
    return
  }
  func.func @transform_0(%arg0: i32, %arg1: i32) -> (i32, i32, i32) {
    %c0_i32 = arith.constant 0 : i32
    %c0_i32_0 = arith.constant 0 : i32
    return %arg0, %arg1, %c0_i32 : i32, i32, i32
  }
  func.func @transform_1(%arg0: i32, %arg1: i32) -> (i32, i32) {
    %c0_i32 = arith.constant 0 : i32
    %c0_i32_0 = arith.constant 0 : i32
    %c0_i32_1 = arith.constant 0 : i32
    return %c0_i32, %c0_i32_0 : i32, i32
  }
  func.func @transform_2(%arg0: i32, %arg1: i32) -> (i32, i32, i32, i32) {
    %c0_i32 = arith.constant 0 : i32
    %c0_i32_0 = arith.constant 0 : i32
    %c0_i32_1 = arith.constant 0 : i32
    return %arg0, %c0_i32, %arg1, %c0_i32_0 : i32, i32, i32, i32
  }
}

module attributes {stable_mosaic.version = 11 : i64} {
  func.func @_base_add_kernel(%arg0: i32, %arg1: i32, %arg2: memref<32x256xf32, #tpu.memory_space<vmem>>, %arg3: memref<256x128xf32, #tpu.memory_space<vmem>>, %arg4: memref<1x128xf32, #tpu.memory_space<vmem>>, %arg5: memref<32x128xf32, #tpu.memory_space<vmem>>, %arg6: memref<32x128xf32, #tpu.memory_space<vmem>>) attributes {dimension_semantics = [#tpu.dimension_semantics<parallel>, #tpu.dimension_semantics<parallel>], iteration_bounds = array<i64: 1, 2>, scalar_prefetch = 0 : i64, scratch_operands = 0 : i64, tpu.core_type = #tpu.core_type<tc>, window_params = [{transform_indices = @transform_0, window_bounds = array<i64: 32, 256>}, {transform_indices = @transform_1, window_bounds = array<i64: 256, 128>}, {transform_indices = @transform_2, window_bounds = array<i64: 1, 128>}, {transform_indices = @transform_3, window_bounds = array<i64: 32, 128>}, {transform_indices = @transform_4, window_bounds = array<i64: 32, 128>}]} {
    %c0 = arith.constant 0 : index
    %c0_0 = arith.constant 0 : index
    %0 = vector.load %arg2[%c0, %c0_0] : memref<32x256xf32, #tpu.memory_space<vmem>>, vector<32x256xf32>
    %c0_1 = arith.constant 0 : index
    %c0_2 = arith.constant 0 : index
    %1 = vector.load %arg3[%c0_1, %c0_2] : memref<256x128xf32, #tpu.memory_space<vmem>>, vector<256x128xf32>
    %cst = arith.constant dense<0.000000e+00> : vector<32x128xf32>
    %2 = tpu.matmul %0, %1, %cst {dimension_numbers = #tpu.dot_dimension_numbers<[1], [0], [0], [1], [0, 0, 1, 1], [], []>} : vector<32x256xf32>, vector<256x128xf32>, vector<32x128xf32> -> vector<32x128xf32>
    %c0_3 = arith.constant 0 : index
    %c0_4 = arith.constant 0 : index
    %3 = vector.load %arg4[%c0_3, %c0_4] : memref<1x128xf32, #tpu.memory_space<vmem>>, vector<1x128xf32>
    %4 = vector.broadcast %3 : vector<1x128xf32> to vector<32x128xf32>
    %5 = arith.addf %2, %4 : vector<32x128xf32>
    %c0_5 = arith.constant 0 : index
    %c0_6 = arith.constant 0 : index
    %6 = vector.load %arg5[%c0_5, %c0_6] : memref<32x128xf32, #tpu.memory_space<vmem>>, vector<32x128xf32>
    %7 = arith.addf %5, %6 : vector<32x128xf32>
    %c0_7 = arith.constant 0 : index
    %c0_8 = arith.constant 0 : index
    %8 = vector.load %arg6[%c0_7, %c0_8] : memref<32x128xf32, #tpu.memory_space<vmem>>, vector<32x128xf32>
    tpu.vector_store %arg6[%c0_7, %c0_8], %7 {strides = array<i32>} : memref<32x128xf32, #tpu.memory_space<vmem>>, vector<32x128xf32>,
    return
  }
  func.func @transform_0(%arg0: i32, %arg1: i32) -> (i32, i32) {
    %c0_i32 = arith.constant 0 : i32
    %c0_i32_0 = arith.constant 0 : i32
    return %arg0, %c0_i32 : i32, i32
  }
  func.func @transform_1(%arg0: i32, %arg1: i32) -> (i32, i32) {
    %c0_i32 = arith.constant 0 : i32
    %c0_i32_0 = arith.constant 0 : i32
    return %c0_i32, %arg1 : i32, i32
  }
  func.func @transform_2(%arg0: i32, %arg1: i32) -> (i32, i32) {
    %c0_i32 = arith.constant 0 : i32
    %c0_i32_0 = arith.constant 0 : i32
    return %c0_i32, %arg1 : i32, i32
  }
  func.func @transform_3(%arg0: i32, %arg1: i32) -> (i32, i32) {
    %c0_i32 = arith.constant 0 : i32
    return %arg0, %arg1 : i32, i32
  }
  func.func @transform_4(%arg0: i32, %arg1: i32) -> (i32, i32) {
    %c0_i32 = arith.constant 0 : i32
    return %arg0, %arg1 : i32, i32
  }
}

</mosaic_0001>

<llo_original>
// kernel: vector_molora_forward.3
$region0: #{vector_molora_forward.3}
  #allocation0 [shape = 'u32[]', space=smem, size = 0x4, offset = 0x4, fixed_abs, tag = 'smem constant byte address 0x4 - core index']
  #allocation1 [shape = 'u32[144,128]{1,0:T(1,128)}', space=vmem, size = 0x12000, scoped, tag = 'internal scratch']
  %s0 = inlined_call_operand.hbm [shape: f32[32,256], index: 0, kind: input, shape index: {}]
  %s1 = inlined_call_operand.hbm [shape: f32[256,256], index: 1, kind: input, shape index: {}]
  %s2 = inlined_call_operand.hbm [shape: f32[1,256], index: 2, kind: input, shape index: {}]
  %s3 = inlined_call_operand.hbm [shape: f32[32,256], index: 3, kind: input, shape index: {}]
  %s4 = inlined_call_operand.hbm [shape: f32[32,256], index: 4, kind: output, shape index: {}]
  %s5 = sld [smem:[#allocation0]]
  $region65: #{vector_molora_forward.3} parent=0
    _
  %s7 = ssub.s32 1, %s5
  %s8 = scalar_select 0, %s7, %s5
  $region1: #{vector_molora_forward.3} parent=0
    #allocation2 [shape = 'u8[32768]{0}', space=vmem, size = 0x8000, scoped, tag = 'input window, operand 0, single buffered']
    #allocation3 [shape = 's32[2]{0}', space=sflag, size = 0x8, scoped, tag = 'scoped memory for vector_molora_forward.3']
    #allocation4 [shape = 's32[2]{0}', space=sflag, size = 0x8, scoped, tag = 'scoped memory for vector_molora_forward.3']
    #allocation5 [shape = 'u8[262144]{0}', space=vmem, size = 0x40000, scoped, tag = 'input window, operand 1']
    #allocation6 [shape = 's32[2]{0}', space=sflag, size = 0x8, scoped, tag = 'scoped memory for vector_molora_forward.3']
    #allocation7 [shape = 'u8[1024]{0}', space=vmem, size = 0x400, scoped, tag = 'input window, operand 2']
    #allocation8 [shape = 'u8[32768]{0}', space=vmem, size = 0x8000, scoped, tag = 'input window, operand 3']
    #allocation9 [shape = 's32[2]{0}', space=sflag, size = 0x8, scoped, tag = 'scoped memory for vector_molora_forward.3']
    #allocation10 [shape = 'u8[32768]{0}', space=vmem, size = 0x8000, scoped, tag = 'output window, operand 0']
    %9 = vsyncpa [#allocation3], 0
    %10 = vsyncpa [#allocation6], 0
    %s11 = scalar_lea.sflag [#allocation6], 1
    %12 = vsyncpa %s11, 0
    %13 = vsyncpa [#allocation9], 0
    %s14 = scalar_lea.sflag [#allocation9], 1
    %15 = vsyncpa %s14, 0
    %16 = vsyncpa [#allocation4], 0
    %s17 = scalar_lea.sflag [#allocation4], 1
    %18 = vsyncpa %s17, 0
    loop: start=0, step=1, limit=4
    $region2: #{vector_molora_forward.3} parent=1 // loop_pre_header
      _
    $region3: #{vector_molora_forward.3} parent=1 // loop_header
      %s20 = sphi 0, %s24
      %p21 = scmp.ge.s32.totalorder %s20, 4
      %s27 = sphi 0, %s39
      %s28 = sphi 0, %s35
      %s29 = sphi 0, %s27
      %s30 = sphi 0, %s28
      %s31 = sphi 0, %s29
      %s32 = sphi 0, %s30
      %s42 = sphi 0, %s44
      %s45 = sphi 0, %s42
      %s46 = sphi 0, %s45
      %s62 = sphi 0, %s46
      %s68 = sphi 0, %s70
      %s71 = sphi 0, %s68
      %s72 = sphi 0, %s71
      %s88 = sphi 0, %s72
      %s94 = sphi 0, %s96
      %s97 = sphi 0, %s94
      %s98 = sphi 0, %s97
      %s114 = sphi 0, %s98
      %s122 = sphi 0, %s124
      %s125 = sphi 0, %s122
      %s126 = sphi 0, %s125
      %s142 = sphi 0, %s126
      %s150 = sphi 0, %s152
      %s153 = sphi 0, %s150
      %s154 = sphi 0, %s153
      %s170 = sphi 0, %s154
    $region4: #{vector_molora_forward.3} parent=1 // loop_header_branch
      %23 = sbr.rel (%p21) target = $region8
    $region5: #{vector_molora_forward.3} parent=1 // loop_body
      %s25 = ssub.s32 %s20, 1
      %s26 = ssub.s32 %s20, 2
      %s33 = sadd.s32 1, %s28
      %p34 = scmp.ge.s32.totalorder %s33, 2
      %s35 = scalar_select %p34, 0, %s33
      %s36 = sadd.s32 1, %s27
      %s37 = scalar_select %p34, %s36, %s27
      %p38 = scmp.ge.s32.totalorder %s37, 1
      %s39 = scalar_select %p38, 0, %s37
      %s40 = ssub.s32 %s27, %s39
      %p41 = scmp.eq.s32.totalorder %s40, 0
      %s43 = sadd.s32 %s42, 1
      %s44 = scalar_select %p41, %s42, %s43
      %p47 = pneg %p41
      %p48 = scmp.eq.s32.totalorder %s20, 1
      %p49 = por %p47, %p48
      %p50 = scmp.ne.s32.totalorder %s42, %s45
      %p51 = scmp.eq.s32.totalorder %s20, 0
      %p52 = por %p50, %p51
      %p53 = scmp.ne.s32.totalorder %s42, %s45
      %p54 = scmp.eq.s32.totalorder %s25, 1
      %p55 = por %p53, %p54
      %p56 = scmp.ne.s32.totalorder %s45, %s46
      %p57 = scmp.eq.s32.totalorder %s25, 0
      %p58 = por %p56, %p57
      %p59 = scmp.ne.s32.totalorder %s45, %s46
      %p60 = scmp.eq.s32.totalorder %s26, 1
      %p61 = por %p59, %p60
      %p63 = scmp.ne.s32.totalorder %s46, %s62
      %p64 = scmp.eq.s32.totalorder %s26, 0
      %p65 = por %p63, %p64
      %s66 = ssub.s32 %s28, %s35
      %p67 = scmp.eq.s32.totalorder %s66, 0
      %s69 = sadd.s32 %s68, 1
      %s70 = scalar_select %p67, %s68, %s69
      %p73 = pneg %p67
      %p74 = scmp.eq.s32.totalorder %s20, 1
      %p75 = por %p73, %p74
      %p76 = scmp.ne.s32.totalorder %s68, %s71
      %p77 = scmp.eq.s32.totalorder %s20, 0
      %p78 = por %p76, %p77
      %p79 = scmp.ne.s32.totalorder %s68, %s71
      %p80 = scmp.eq.s32.totalorder %s25, 1
      %p81 = por %p79, %p80
      %p82 = scmp.ne.s32.totalorder %s71, %s72
      %p83 = scmp.eq.s32.totalorder %s25, 0
      %p84 = por %p82, %p83
      %p85 = scmp.ne.s32.totalorder %s71, %s72
      %p86 = scmp.eq.s32.totalorder %s26, 1
      %p87 = por %p85, %p86
      %p89 = scmp.ne.s32.totalorder %s72, %s88
      %p90 = scmp.eq.s32.totalorder %s26, 0
      %p91 = por %p89, %p90
      %s92 = ssub.s32 %s28, %s35
      %p93 = scmp.eq.s32.totalorder %s92, 0
      %s95 = sadd.s32 %s94, 1
      %s96 = scalar_select %p93, %s94, %s95
      %p99 = pneg %p93
      %p100 = scmp.eq.s32.totalorder %s20, 1
      %p101 = por %p99, %p100
      %p102 = scmp.ne.s32.totalorder %s94, %s97
      %p103 = scmp.eq.s32.totalorder %s20, 0
      %p104 = por %p102, %p103
      %p105 = scmp.ne.s32.totalorder %s94, %s97
      %p106 = scmp.eq.s32.totalorder %s25, 1
      %p107 = por %p105, %p106
      %p108 = scmp.ne.s32.totalorder %s97, %s98
      %p109 = scmp.eq.s32.totalorder %s25, 0
      %p110 = por %p108, %p109
      %p111 = scmp.ne.s32.totalorder %s97, %s98
      %p112 = scmp.eq.s32.totalorder %s26, 1
      %p113 = por %p111, %p112
      %p115 = scmp.ne.s32.totalorder %s98, %s114
      %p116 = scmp.eq.s32.totalorder %s26, 0
      %p117 = por %p115, %p116
      %s118 = ssub.s32 %s27, %s39
      %s119 = ssub.s32 %s28, %s35
      %s120 = sor.u32 %s118, %s119
      %p121 = scmp.eq.s32.totalorder %s120, 0
      %s123 = sadd.s32 %s122, 1
      %s124 = scalar_select %p121, %s122, %s123
      %p127 = pneg %p121
      %p128 = scmp.eq.s32.totalorder %s20, 1
      %p129 = por %p127, %p128
      %p130 = scmp.ne.s32.totalorder %s122, %s125
      %p131 = scmp.eq.s32.totalorder %s20, 0
      %p132 = por %p130, %p131
      %p133 = scmp.ne.s32.totalorder %s122, %s125
      %p134 = scmp.eq.s32.totalorder %s25, 1
      %p135 = por %p133, %p134
      %p136 = scmp.ne.s32.totalorder %s125, %s126
      %p137 = scmp.eq.s32.totalorder %s25, 0
      %p138 = por %p136, %p137
      %p139 = scmp.ne.s32.totalorder %s125, %s126
      %p140 = scmp.eq.s32.totalorder %s26, 1
      %p141 = por %p139, %p140
      %p143 = scmp.ne.s32.totalorder %s126, %s142
      %p144 = scmp.eq.s32.totalorder %s26, 0
      %p145 = por %p143, %p144
      %s146 = ssub.s32 %s27, %s39
      %s147 = ssub.s32 %s28, %s35
      %s148 = sor.u32 %s146, %s147
      %p149 = scmp.eq.s32.totalorder %s148, 0
      %s151 = sadd.s32 %s150, 1
      %s152 = scalar_select %p149, %s150, %s151
      %p155 = pneg %p149
      %p156 = scmp.eq.s32.totalorder %s20, 1
      %p157 = por %p155, %p156
      %p158 = scmp.ne.s32.totalorder %s150, %s153
      %p159 = scmp.eq.s32.totalorder %s20, 0
      %p160 = por %p158, %p159
      %p161 = scmp.ne.s32.totalorder %s150, %s153
      %p162 = scmp.eq.s32.totalorder %s25, 1
      %p163 = por %p161, %p162
      %p164 = scmp.ne.s32.totalorder %s153, %s154
      %p165 = scmp.eq.s32.totalorder %s25, 0
      %p166 = por %p164, %p165
      %p167 = scmp.ne.s32.totalorder %s153, %s154
      %p168 = scmp.eq.s32.totalorder %s26, 1
      %p169 = por %p167, %p168
      %p171 = scmp.ne.s32.totalorder %s154, %s170
      %p172 = scmp.eq.s32.totalorder %s26, 0
      %p173 = por %p171, %p172
      %p174 = scmp.le.s32.totalorder 1, %s20
      %p175 = scmp.lt.s32.totalorder %s20, 3
      %p176 = pnand %p174, %p175
      %p177 = pneg %p176
      // Predicated region
      $region9: #{vector_molora_forward.3} parent=5 // pred_check
        _
      $region10: #{vector_molora_forward.3} parent=5 // pred_check_branch
        %179 = sbr.rel (%p176) target = $region12
      $region11: #{vector_molora_forward.3} parent=5 // pred_region
        %s180 = ssub.s32 %s20, 1
        // Predicated region
        $region13: #{vector_molora_forward.3} parent=11 // pred_check
          %p181 = pneg %p58
        $region14: #{vector_molora_forward.3} parent=11 // pred_check_branch
          %183 = sbr.rel (%p181) target = $region16
        $region15: #{vector_molora_forward.3} parent=11 // pred_region
          %s184 = smul.u32 4, %s29
          %s186 = ssub.s32 1024, 1024
          %187 = vsyncadd [#allocation3], %s186
          %s188 = smul.addr %s184, 2
          %s189 = smul.addr %s188, 128
          %s190 = scalar_lea.hbm %s0, %s189
          %s191 = sshll.u32 [#allocation2], 4
          %s192 = int_to_ptr.vmem [resolvable:$true] %s191
          %197 = dma.hbm_to_vmem [thread:$0]  %s190, 1024, %s192, [#allocation3], 256, 256, 16
        $region16: #{vector_molora_forward.3} parent=11 // pred_fallthru
          _
      $region12: #{vector_molora_forward.3} parent=5 // pred_fallthru
        _
      %p198 = scmp.lt.s32.totalorder %s20, 2
      // Predicated region
      $region17: #{vector_molora_forward.3} parent=5 // pred_check
        %p199 = pneg %p198
      $region18: #{vector_molora_forward.3} parent=5 // pred_check_branch
        %201 = sbr.rel (%p199) target = $region20
      $region19: #{vector_molora_forward.3} parent=5 // pred_region
        // Predicated region
        $region21: #{vector_molora_forward.3} parent=19 // pred_check
          %p202 = pneg %p78
        $region22: #{vector_molora_forward.3} parent=19 // pred_check_branch
          %204 = sbr.rel (%p202) target = $region24
        $region23: #{vector_molora_forward.3} parent=19 // pred_region
          %s205 = sand.u32 %s20, 1
          %s206 = scalar_lea.sflag [#allocation6], %s205
          %s207 = sand.u32 %s68, 1
          %s208 = smul.addr %s207, 256
          %s209 = scalar_lea.vmem [#allocation5], %s208
          %s211 = ssub.s32 4096, 4096
          %212 = vsyncadd %s206, %s211
          %s213 = smul.addr %s28, 128
          %s214 = scalar_lea.hbm %s1, %s213
          %s215 = sshll.u32 %s209, 4
          %s216 = int_to_ptr.vmem [resolvable:$true] %s215
          %221 = dma.hbm_to_vmem [thread:$0]  %s214, 4096, %s216, %s206, 256, 128, 8
        $region24: #{vector_molora_forward.3} parent=19 // pred_fallthru
          _
        // Predicated region
        $region25: #{vector_molora_forward.3} parent=19 // pred_check
          %p222 = pneg %p104
        $region26: #{vector_molora_forward.3} parent=19 // pred_check_branch
          %224 = sbr.rel (%p222) target = $region28
        $region27: #{vector_molora_forward.3} parent=19 // pred_region
          %s225 = sand.u32 %s20, 1
          %s226 = scalar_lea.sflag [#allocation6], %s225
          %s227 = sand.u32 %s94, 1
          %s228 = scalar_lea.vmem [#allocation7], %s227
          %s230 = ssub.s32 16, 16
          %231 = vsyncadd %s226, %s230
          %s232 = smul.addr %s28, 16
          %s233 = scalar_lea.hbm %s2, %s232
          %s235 = sshll.u32 %s228, 4
          %s236 = int_to_ptr.vmem [resolvable:$true] %s235
          %238 = dma.hbm_to_vmem [thread:$0]  %s233, 16, %s236, %s226
        $region28: #{vector_molora_forward.3} parent=19 // pred_fallthru
          _
        // Predicated region
        $region29: #{vector_molora_forward.3} parent=19 // pred_check
          %p239 = pneg %p132
        $region30: #{vector_molora_forward.3} parent=19 // pred_check_branch
          %241 = sbr.rel (%p239) target = $region32
        $region31: #{vector_molora_forward.3} parent=19 // pred_region
          %s242 = sand.u32 %s122, 1
          %s243 = scalar_lea.sflag [#allocation9], %s242
          %s244 = sand.u32 %s122, 1
          %s245 = smul.addr %s244, 32
          %s246 = scalar_lea.vmem [#allocation8], %s245
          %s247 = smul.u32 4, %s27
          %s249 = ssub.s32 512, 512
          %250 = vsyncadd %s243, %s249
          %s251 = smul.addr %s247, 2
          %s252 = sadd.s32 %s28, %s251
          %s253 = smul.addr %s252, 128
          %s254 = scalar_lea.hbm %s3, %s253
          %s255 = sshll.u32 %s246, 4
          %s256 = int_to_ptr.vmem [resolvable:$true] %s255
          %261 = dma.hbm_to_vmem [thread:$0]  %s254, 512, %s256, %s243, 256, 128, 8
        $region32: #{vector_molora_forward.3} parent=19 // pred_fallthru
          _
      $region20: #{vector_molora_forward.3} parent=5 // pred_fallthru
        _
      %p262 = scmp.le.s32.totalorder 1, %s20
      %p263 = scmp.lt.s32.totalorder %s20, 3
      %p264 = pnand %p262, %p263
      %p265 = pneg %p264
      // Predicated region
      $region33: #{vector_molora_forward.3} parent=5 // pred_check
        _
      $region34: #{vector_molora_forward.3} parent=5 // pred_check_branch
        %267 = sbr.rel (%p264) target = $region36
      $region35: #{vector_molora_forward.3} parent=5 // pred_region
        %s268 = ssub.s32 %s20, 1
        // Predicated region
        $region37: #{vector_molora_forward.3} parent=35 // pred_check
          %p269 = pneg %p58
        $region38: #{vector_molora_forward.3} parent=35 // pred_check_branch
          %271 = sbr.rel (%p269) target = $region40
        $region39: #{vector_molora_forward.3} parent=35 // pred_region
          %272 = dma.done [#allocation3], 1024
        $region40: #{vector_molora_forward.3} parent=35 // pred_fallthru
          _
        %s273 = sand.u32 %s25, 1
        %s274 = scalar_lea.sflag [#allocation6], %s273
        %s275 = sand.u32 %s71, 1
        %s276 = smul.addr %s275, 256
        %s277 = scalar_lea.vmem [#allocation5], %s276
        // Predicated region
        $region41: #{vector_molora_forward.3} parent=35 // pred_check
          %p278 = pneg %p84
        $region42: #{vector_molora_forward.3} parent=35 // pred_check_branch
          %280 = sbr.rel (%p278) target = $region44
        $region43: #{vector_molora_forward.3} parent=35 // pred_region
          %281 = dma.done %s274, 4096
        $region44: #{vector_molora_forward.3} parent=35 // pred_fallthru
          _
        %s282 = sand.u32 %s25, 1
        %s283 = scalar_lea.sflag [#allocation6], %s282
        %s284 = sand.u32 %s97, 1
        %s285 = scalar_lea.vmem [#allocation7], %s284
        // Predicated region
        $region45: #{vector_molora_forward.3} parent=35 // pred_check
          %p286 = pneg %p110
        $region46: #{vector_molora_forward.3} parent=35 // pred_check_branch
          %288 = sbr.rel (%p286) target = $region48
        $region47: #{vector_molora_forward.3} parent=35 // pred_region
          %289 = dma.done %s283, 16
        $region48: #{vector_molora_forward.3} parent=35 // pred_fallthru
          _
        %s290 = sand.u32 %s125, 1
        %s291 = scalar_lea.sflag [#allocation9], %s290
        %s292 = sand.u32 %s125, 1
        %s293 = smul.addr %s292, 32
        %s294 = scalar_lea.vmem [#allocation8], %s293
        // Predicated region
        $region49: #{vector_molora_forward.3} parent=35 // pred_check
          %p295 = pneg %p138
        $region50: #{vector_molora_forward.3} parent=35 // pred_check_branch
          %297 = sbr.rel (%p295) target = $region52
        $region51: #{vector_molora_forward.3} parent=35 // pred_region
          %298 = dma.done %s291, 512
        $region52: #{vector_molora_forward.3} parent=35 // pred_fallthru
          _
        %p299 = pneg %p58
        %p300 = pneg %p55
        %s301 = sand.u32 %s25, 1
        %s302 = scalar_lea.sflag [#allocation6], %s301
        %s303 = sand.u32 %s71, 1
        %s304 = smul.addr %s303, 256
        %s305 = scalar_lea.vmem [#allocation5], %s304
        %p306 = pneg %p84
        %p307 = pneg %p81
        %s308 = sand.u32 %s25, 1
        %s309 = scalar_lea.sflag [#allocation6], %s308
        %s310 = sand.u32 %s97, 1
        %s311 = scalar_lea.vmem [#allocation7], %s310
        %p312 = pneg %p110
        %p313 = pneg %p107
        %s314 = sand.u32 %s125, 1
        %s315 = scalar_lea.sflag [#allocation9], %s314
        %s316 = sand.u32 %s125, 1
        %s317 = smul.addr %s316, 32
        %s318 = scalar_lea.vmem [#allocation8], %s317
        %p319 = pneg %p138
        %p320 = pneg %p135
        %p321 = pneg %p166
        %p322 = pneg %p163
        %s323 = sand.u32 %s153, 1
        %s324 = scalar_lea.sflag [#allocation4], %s323
        %s325 = sand.u32 %s153, 1
        %s326 = smul.addr %s325, 32
        %s327 = scalar_lea.vmem [#allocation10], %s326
        %s328 = smul.u32 4, %s29
        %s329 = smul.u32 4, %s29
        %s330 = smul.u32 4, %s29
        %v331 = vld [vmem:[#allocation2] sm:$0xff]
        %v332 = vld [vmem:[#allocation2 + $0x8] sm:$0xff]
        %v333 = vld [vmem:[#allocation2 + $0x10] sm:$0xff]
        %v334 = vld [vmem:[#allocation2 + $0x18] sm:$0xff]
        %v335 = vld [vmem:[#allocation2 + $0x20] sm:$0xff]
        %v336 = vld [vmem:[#allocation2 + $0x28] sm:$0xff]
        %v337 = vld [vmem:[#allocation2 + $0x30] sm:$0xff]
        %v338 = vld [vmem:[#allocation2 + $0x38] sm:$0xff]
        %v339 = vld [vmem:[%s277] sm:$0xff]
        %v340 = vld [vmem:[%s277 + $0x8] sm:$0xff]
        %v341 = vld [vmem:[%s277 + $0x10] sm:$0xff]
        %v342 = vld [vmem:[%s277 + $0x18] sm:$0xff]
        %v343 = vld [vmem:[%s277 + $0x20] sm:$0xff]
        %v344 = vld [vmem:[%s277 + $0x28] sm:$0xff]
        %v345 = vld [vmem:[%s277 + $0x30] sm:$0xff]
        %v346 = vld [vmem:[%s277 + $0x38] sm:$0xff]
        %v347 = vld [vmem:[%s277 + $0x40] sm:$0xff]
        %v348 = vld [vmem:[%s277 + $0x48] sm:$0xff]
        %v349 = vld [vmem:[%s277 + $0x50] sm:$0xff]
        %v350 = vld [vmem:[%s277 + $0x58] sm:$0xff]
        %v351 = vld [vmem:[%s277 + $0x60] sm:$0xff]
        %v352 = vld [vmem:[%s277 + $0x68] sm:$0xff]
        %v353 = vld [vmem:[%s277 + $0x70] sm:$0xff]
        %v354 = vld [vmem:[%s277 + $0x78] sm:$0xff]
        %v355 = vld [vmem:[%s277 + $0x80] sm:$0xff]
        %v356 = vld [vmem:[%s277 + $0x88] sm:$0xff]
        %v357 = vld [vmem:[%s277 + $0x90] sm:$0xff]
        %v358 = vld [vmem:[%s277 + $0x98] sm:$0xff]
        %v359 = vld [vmem:[%s277 + $0xa0] sm:$0xff]
        %v360 = vld [vmem:[%s277 + $0xa8] sm:$0xff]
        %v361 = vld [vmem:[%s277 + $0xb0] sm:$0xff]
        %v362 = vld [vmem:[%s277 + $0xb8] sm:$0xff]
        %v363 = vld [vmem:[%s277 + $0xc0] sm:$0xff]
        %v364 = vld [vmem:[%s277 + $0xc8] sm:$0xff]
        %v365 = vld [vmem:[%s277 + $0xd0] sm:$0xff]
        %v366 = vld [vmem:[%s277 + $0xd8] sm:$0xff]
        %v367 = vld [vmem:[%s277 + $0xe0] sm:$0xff]
        %v368 = vld [vmem:[%s277 + $0xe8] sm:$0xff]
        %v369 = vld [vmem:[%s277 + $0xf0] sm:$0xff]
        %v370 = vld [vmem:[%s277 + $0xf8] sm:$0xff]
        %v371 = vld [vmem:[%s285] sm:$0x1]
        %v373 = vlaneseq
        %v374 = vshrl.u32 %v373, 7
        %v375 = vsub.s32 0, %v374
        %v376 = vrot.slane %v371, %v375
        %378 = vmatprep.subr.mxu0 0.0
        %379 = vmatpush1.msra.mxu0 %v339
        %380 = vmatprep.subr.mxu0 0.0
        %381 = vmatpush1.msra.mxu0 %v340
        %382 = vmatprep.subr.mxu0 0.0
        %383 = vmatpush1.msra.mxu0 %v341
        %384 = vmatprep.subr.mxu0 0.0
        %385 = vmatpush1.msra.mxu0 %v342
        %386 = vmatprep.subr.mxu0 0.0
        %387 = vmatpush1.msra.mxu0 %v343
        %388 = vmatprep.subr.mxu0 0.0
        %389 = vmatpush1.msra.mxu0 %v344
        %390 = vmatprep.subr.mxu0 0.0
        %391 = vmatpush1.msra.mxu0 %v345
        %392 = vmatprep.subr.mxu0 0.0
        %393 = vmatpush1.msra.mxu0 %v346
        %394 = vmatprep.subr.mxu0 0.0
        %395 = vmatpush1.msra.mxu0 %v347
        %396 = vmatprep.subr.mxu0 0.0
        %397 = vmatpush1.msra.mxu0 %v348
        %398 = vmatprep.subr.mxu0 0.0
        %399 = vmatpush1.msra.mxu0 %v349
        %400 = vmatprep.subr.mxu0 0.0
        %401 = vmatpush1.msra.mxu0 %v350
        %402 = vmatprep.subr.mxu0 0.0
        %403 = vmatpush1.msra.mxu0 %v351
        %404 = vmatprep.subr.mxu0 0.0
        %405 = vmatpush1.msra.mxu0 %v352
        %406 = vmatprep.subr.mxu0 0.0
        %407 = vmatpush1.msra.mxu0 %v353
        %408 = vmatprep.subr.mxu0 0.0
        %409 = vmatpush1.msra.mxu0 %v354
        %410 = vmatprep.subr.mxu0 0.0
        %411 = vmatpush1.msra.mxu0 %v355
        %412 = vmatprep.subr.mxu0 0.0
        %413 = vmatpush1.msra.mxu0 %v356
        %414 = vmatprep.subr.mxu0 0.0
        %415 = vmatpush1.msra.mxu0 %v357
        %416 = vmatprep.subr.mxu0 0.0
        %417 = vmatpush1.msra.mxu0 %v358
        %418 = vmatprep.subr.mxu0 0.0
        %419 = vmatpush1.msra.mxu0 %v359
        %420 = vmatprep.subr.mxu0 0.0
        %421 = vmatpush1.msra.mxu0 %v360
        %422 = vmatprep.subr.mxu0 0.0
        %423 = vmatpush1.msra.mxu0 %v361
        %424 = vmatprep.subr.mxu0 0.0
        %425 = vmatpush1.msra.mxu0 %v362
        %426 = vmatprep.subr.mxu0 0.0
        %427 = vmatpush1.msra.mxu0 %v363
        %428 = vmatprep.subr.mxu0 0.0
        %429 = vmatpush1.msra.mxu0 %v364
        %430 = vmatprep.subr.mxu0 0.0
        %431 = vmatpush1.msra.mxu0 %v365
        %432 = vmatprep.subr.mxu0 0.0
        %433 = vmatpush1.msra.mxu0 %v366
        %434 = vmatprep.subr.mxu0 0.0
        %435 = vmatpush1.msra.mxu0 %v367
        %436 = vmatprep.subr.mxu0 0.0
        %437 = vmatpush1.msra.mxu0 %v368
        %438 = vmatprep.subr.mxu0 0.0
        %439 = vmatpush1.msra.mxu0 %v369
        %440 = vmatprep.subr.mxu0 0.0
        %441 = vmatpush1.msra.mxu0 %v370
        %442 = vmatprep.mubr.f32.mxu0 %v332
        %443 = vmatmul.mubr.f32.gmra.mrb[0].mxu0 %v331
        %v444 = vpop.f32.mrb[0].mxu0
        %v445 = vadd.f32 %v376, %v444
        %v446 = vpop.f32.mrb[0].mxu0
        %447 = vmatprep.mubr.f32.mxu0 %v334
        %448 = vmatmul.mubr.f32.gmra.mrb[0].mxu0 %v333
        %v449 = vpop.f32.mrb[0].mxu0
        %v450 = vadd.f32 %v376, %v449
        %v451 = vpop.f32.mrb[0].mxu0
        %452 = vmatprep.mubr.f32.mxu0 %v336
        %453 = vmatmul.mubr.f32.gmra.mrb[0].mxu0 %v335
        %v454 = vpop.f32.mrb[0].mxu0
        %v455 = vadd.f32 %v376, %v454
        %v456 = vpop.f32.mrb[0].mxu0
        %457 = vmatprep.mubr.f32.mxu0 %v338
        %458 = vmatmul.mubr.f32.gmra.mrb[0].mxu0 %v337
        %v459 = vpop.f32.mrb[0].mxu0
        %v460 = vadd.f32 %v376, %v459
        %v461 = vpop.f32.mrb[0].mxu0
        %462 = vdwg.mxu0
        %v463 = vld [vmem:[%s294] sm:$0xff]
        %v464 = vld [vmem:[%s294 + $0x8] sm:$0xff]
        %v465 = vld [vmem:[%s294 + $0x10] sm:$0xff]
        %v466 = vld [vmem:[%s294 + $0x18] sm:$0xff]
        %v467 = vadd.f32 %v445, %v463
        %v468 = vadd.f32 %v450, %v464
        %v469 = vadd.f32 %v455, %v465
        %v470 = vadd.f32 %v460, %v466
        %471 = vst [vmem:[%s327] sm:$0xff] %v467
        %472 = vst [vmem:[%s327 + $0x8] sm:$0xff] %v468
        %473 = vst [vmem:[%s327 + $0x10] sm:$0xff] %v469
        %474 = vst [vmem:[%s327 + $0x18] sm:$0xff] %v470
        %s475 = sand.u32 %s153, 1
        %s476 = scalar_lea.sflag [#allocation4], %s475
        %s477 = sand.u32 %s153, 1
        %s478 = smul.addr %s477, 32
        %s479 = scalar_lea.vmem [#allocation10], %s478
        // Predicated region
        $region53: #{vector_molora_forward.3} parent=35 // pred_check
          %p480 = pneg %p163
        $region54: #{vector_molora_forward.3} parent=35 // pred_check_branch
          %482 = sbr.rel (%p480) target = $region56
        $region55: #{vector_molora_forward.3} parent=35 // pred_region
          %s483 = smul.u32 4, %s29
          %s485 = ssub.s32 512, 512
          %486 = vsyncadd %s476, %s485
          %s487 = smul.addr %s483, 2
          %s488 = sadd.s32 %s30, %s487
          %s489 = smul.addr %s488, 128
          %s490 = scalar_lea.hbm %s4, %s489
          %s491 = sshll.u32 %s479, 4
          %s492 = int_to_ptr.vmem [resolvable:$true] %s491
          %497 = dma.vmem_to_hbm [thread:$0]  %s492, 512, %s490, %s476, 128, 256, 8
        $region56: #{vector_molora_forward.3} parent=35 // pred_fallthru
          _
      $region36: #{vector_molora_forward.3} parent=5 // pred_fallthru
        _
      %p498 = scmp.le.s32.totalorder 2, %s20
      // Predicated region
      $region57: #{vector_molora_forward.3} parent=5 // pred_check
        %p499 = pneg %p498
      $region58: #{vector_molora_forward.3} parent=5 // pred_check_branch
        %501 = sbr.rel (%p499) target = $region60
      $region59: #{vector_molora_forward.3} parent=5 // pred_region
        %s502 = ssub.s32 %s20, 2
        // Predicated region
        $region61: #{vector_molora_forward.3} parent=59 // pred_check
          %p503 = pneg %p169
        $region62: #{vector_molora_forward.3} parent=59 // pred_check_branch
          %505 = sbr.rel (%p503) target = $region64
        $region63: #{vector_molora_forward.3} parent=59 // pred_region
          %s506 = sand.u32 %s154, 1
          %s507 = scalar_lea.sflag [#allocation4], %s506
          %s508 = sand.u32 %s154, 1
          %s509 = smul.addr %s508, 32
          %s510 = scalar_lea.vmem [#allocation10], %s509
          %511 = dma.done %s507, 512
        $region64: #{vector_molora_forward.3} parent=59 // pred_fallthru
          _
      $region60: #{vector_molora_forward.3} parent=5 // pred_fallthru
        _
    $region6: #{vector_molora_forward.3} parent=1 // loop_footer
      %s24 = sadd.s32 1, %s20
    $region7: #{vector_molora_forward.3} parent=1 // loop_footer_branch
      %19 = sbr.rel target = $region3
    $region8: #{vector_molora_forward.3} parent=1 // loop_exit
      _
    %512 = vsyncpa [#allocation3], 1
    %s513 = scalar_lea.sflag [#allocation3], 1
    %514 = vsyncpa %s513, 1
    %515 = vsyncpa [#allocation6], 1
    %s516 = scalar_lea.sflag [#allocation6], 1
    %517 = vsyncpa %s516, 1
    %518 = vsyncpa [#allocation9], 1
    %s519 = scalar_lea.sflag [#allocation9], 1
    %520 = vsyncpa %s519, 1
    %521 = vsyncpa [#allocation4], 1
    %s522 = scalar_lea.sflag [#allocation4], 1
    %523 = vsyncpa %s522, 1

// kernel: vector_molora_forward.2
$region0: #{vector_molora_forward.2}
  #allocation0 [shape = 'u32[]', space=smem, size = 0x4, offset = 0x4, fixed_abs, tag = 'smem constant byte address 0x4 - core index']
  #allocation1 [shape = 'u32[144,128]{1,0:T(1,128)}', space=vmem, size = 0x12000, scoped, tag = 'internal scratch']
  %s0 = inlined_call_operand.hbm [shape: f32[2,16,256], index: 0, kind: input, shape index: {}]
  %s1 = inlined_call_operand.hbm [shape: f32[64,32], index: 1, kind: input, shape index: {}]
  %s2 = inlined_call_operand.hbm [shape: f32[2,8,16,32], index: 2, kind: output, shape index: {}]
  %s3 = sld [smem:[#allocation0]]
  $region49: #{vector_molora_forward.2} parent=0
    _
  %s5 = ssub.s32 1, %s3
  %s6 = scalar_select 0, %s5, %s3
  $region1: #{vector_molora_forward.2} parent=0
    #allocation2 [shape = 'u8[32768]{0}', space=vmem, size = 0x8000, scoped, tag = 'input window, operand 0']
    #allocation3 [shape = 's32[2]{0}', space=sflag, size = 0x8, scoped, tag = 'scoped memory for vector_molora_forward.2']
    #allocation4 [shape = 's32[2]{0}', space=sflag, size = 0x8, scoped, tag = 'scoped memory for vector_molora_forward.2']
    #allocation5 [shape = 'u8[32768]{0}', space=vmem, size = 0x8000, scoped, tag = 'input window, operand 1, single buffered']
    #allocation6 [shape = 's32[1]{0}', space=sflag, size = 0x4, scoped, tag = 'scoped memory for vector_molora_forward.2']
    #allocation7 [shape = 'u8[131072]{0}', space=vmem, size = 0x20000, scoped, tag = 'output window, operand 0']
    %7 = vsyncpa [#allocation3], 0
    %s8 = scalar_lea.sflag [#allocation3], 1
    %9 = vsyncpa %s8, 0
    %10 = vsyncpa [#allocation6], 0
    %11 = vsyncpa [#allocation4], 0
    %s12 = scalar_lea.sflag [#allocation4], 1
    %13 = vsyncpa %s12, 0
    loop: start=0, step=1, limit=4
    $region2: #{vector_molora_forward.2} parent=1 // loop_pre_header
      _
    $region3: #{vector_molora_forward.2} parent=1 // loop_header
      %s15 = sphi 0, %s19
      %p16 = scmp.ge.s32.totalorder %s15, 4
      %s22 = sphi 0, %s34
      %s23 = sphi 0, %s30
      %s24 = sphi 0, %s22
      %s25 = sphi 0, %s23
      %s26 = sphi 0, %s24
      %s27 = sphi 0, %s25
      %s39 = sphi 0, %s41
      %s42 = sphi 0, %s39
      %s43 = sphi 0, %s42
      %s59 = sphi 0, %s43
      %s63 = sphi 0, %s63
      %s65 = sphi 0, %s63
      %s66 = sphi 0, %s65
      %s80 = sphi 0, %s66
      %s88 = sphi 0, %s90
      %s91 = sphi 0, %s88
      %s92 = sphi 0, %s91
      %s108 = sphi 0, %s92
    $region4: #{vector_molora_forward.2} parent=1 // loop_header_branch
      %18 = sbr.rel (%p16) target = $region8
    $region5: #{vector_molora_forward.2} parent=1 // loop_body
      %s20 = ssub.s32 %s15, 1
      %s21 = ssub.s32 %s15, 2
      %s28 = sadd.s32 1, %s23
      %p29 = scmp.ge.s32.totalorder %s28, 1
      %s30 = scalar_select %p29, 0, %s28
      %s31 = sadd.s32 1, %s22
      %s32 = scalar_select %p29, %s31, %s22
      %p33 = scmp.ge.s32.totalorder %s32, 2
      %s34 = scalar_select %p33, 0, %s32
      %s35 = ssub.s32 %s22, %s34
      %s36 = ssub.s32 %s23, %s30
      %s37 = sor.u32 %s35, %s36
      %p38 = scmp.eq.s32.totalorder %s37, 0
      %s40 = sadd.s32 %s39, 1
      %s41 = scalar_select %p38, %s39, %s40
      %p44 = pneg %p38
      %p45 = scmp.eq.s32.totalorder %s15, 1
      %p46 = por %p44, %p45
      %p47 = scmp.ne.s32.totalorder %s39, %s42
      %p48 = scmp.eq.s32.totalorder %s15, 0
      %p49 = por %p47, %p48
      %p50 = scmp.ne.s32.totalorder %s39, %s42
      %p51 = scmp.eq.s32.totalorder %s20, 1
      %p52 = por %p50, %p51
      %p53 = scmp.ne.s32.totalorder %s42, %s43
      %p54 = scmp.eq.s32.totalorder %s20, 0
      %p55 = por %p53, %p54
      %p56 = scmp.ne.s32.totalorder %s42, %s43
      %p57 = scmp.eq.s32.totalorder %s21, 1
      %p58 = por %p56, %p57
      %p60 = scmp.ne.s32.totalorder %s43, %s59
      %p61 = scmp.eq.s32.totalorder %s21, 0
      %p62 = por %p60, %p61
      %s64 = sadd.s32 %s63, 1
      %p67 = scmp.eq.s32.totalorder %s15, 1
      %p68 = scmp.ne.s32.totalorder %s63, %s65
      %p69 = scmp.eq.s32.totalorder %s15, 0
      %p70 = por %p68, %p69
      %p71 = scmp.ne.s32.totalorder %s63, %s65
      %p72 = scmp.eq.s32.totalorder %s20, 1
      %p73 = por %p71, %p72
      %p74 = scmp.ne.s32.totalorder %s65, %s66
      %p75 = scmp.eq.s32.totalorder %s20, 0
      %p76 = por %p74, %p75
      %p77 = scmp.ne.s32.totalorder %s65, %s66
      %p78 = scmp.eq.s32.totalorder %s21, 1
      %p79 = por %p77, %p78
      %p81 = scmp.ne.s32.totalorder %s66, %s80
      %p82 = scmp.eq.s32.totalorder %s21, 0
      %p83 = por %p81, %p82
      %s84 = ssub.s32 %s22, %s34
      %s85 = ssub.s32 %s23, %s30
      %s86 = sor.u32 %s84, %s85
      %p87 = scmp.eq.s32.totalorder %s86, 0
      %s89 = sadd.s32 %s88, 1
      %s90 = scalar_select %p87, %s88, %s89
      %p93 = pneg %p87
      %p94 = scmp.eq.s32.totalorder %s15, 1
      %p95 = por %p93, %p94
      %p96 = scmp.ne.s32.totalorder %s88, %s91
      %p97 = scmp.eq.s32.totalorder %s15, 0
      %p98 = por %p96, %p97
      %p99 = scmp.ne.s32.totalorder %s88, %s91
      %p100 = scmp.eq.s32.totalorder %s20, 1
      %p101 = por %p99, %p100
      %p102 = scmp.ne.s32.totalorder %s91, %s92
      %p103 = scmp.eq.s32.totalorder %s20, 0
      %p104 = por %p102, %p103
      %p105 = scmp.ne.s32.totalorder %s91, %s92
      %p106 = scmp.eq.s32.totalorder %s21, 1
      %p107 = por %p105, %p106
      %p109 = scmp.ne.s32.totalorder %s92, %s108
      %p110 = scmp.eq.s32.totalorder %s21, 0
      %p111 = por %p109, %p110
      %p112 = scmp.le.s32.totalorder 1, %s15
      %p113 = scmp.lt.s32.totalorder %s15, 3
      %p114 = pnand %p112, %p113
      %p115 = pneg %p114
      // Predicated region
      $region9: #{vector_molora_forward.2} parent=5 // pred_check
        _
      $region10: #{vector_molora_forward.2} parent=5 // pred_check_branch
        %117 = sbr.rel (%p114) target = $region12
      $region11: #{vector_molora_forward.2} parent=5 // pred_region
        %s118 = ssub.s32 %s15, 1
        // Predicated region
        $region13: #{vector_molora_forward.2} parent=11 // pred_check
          %p119 = pneg %p76
        $region14: #{vector_molora_forward.2} parent=11 // pred_check_branch
          %121 = sbr.rel (%p119) target = $region16
        $region15: #{vector_molora_forward.2} parent=11 // pred_region
          %s123 = ssub.s32 1024, 1024
          %124 = vsyncadd [#allocation6], %s123
          %s125 = sshll.u32 [#allocation5], 4
          %s126 = int_to_ptr.vmem [resolvable:$true] %s125
          %131 = dma.hbm_to_vmem [thread:$0]  %s1, 1024, %s126, [#allocation6], 128, 128, 8
        $region16: #{vector_molora_forward.2} parent=11 // pred_fallthru
          _
      $region12: #{vector_molora_forward.2} parent=5 // pred_fallthru
        _
      %p132 = scmp.lt.s32.totalorder %s15, 2
      // Predicated region
      $region17: #{vector_molora_forward.2} parent=5 // pred_check
        %p133 = pneg %p132
      $region18: #{vector_molora_forward.2} parent=5 // pred_check_branch
        %135 = sbr.rel (%p133) target = $region20
      $region19: #{vector_molora_forward.2} parent=5 // pred_region
        // Predicated region
        $region21: #{vector_molora_forward.2} parent=19 // pred_check
          %p136 = pneg %p49
        $region22: #{vector_molora_forward.2} parent=19 // pred_check_branch
          %138 = sbr.rel (%p136) target = $region24
        $region23: #{vector_molora_forward.2} parent=19 // pred_region
          %s139 = sand.u32 %s39, 1
          %s140 = scalar_lea.sflag [#allocation3], %s139
          %s141 = sand.u32 %s39, 1
          %s142 = smul.addr %s141, 32
          %s143 = scalar_lea.vmem [#allocation2], %s142
          %s144 = smul.u32 2, %s23
          %s146 = ssub.s32 512, 512
          %147 = vsyncadd %s140, %s146
          %s148 = smul.addr %s144, 2
          %s149 = smul.addr %s22, 4
          %s150 = sadd.s32 %s148, %s149
          %s151 = smul.addr %s150, 128
          %s152 = scalar_lea.hbm %s0, %s151
          %s153 = sshll.u32 %s143, 4
          %s154 = int_to_ptr.vmem [resolvable:$true] %s153
          %159 = dma.hbm_to_vmem [thread:$0]  %s152, 512, %s154, %s140, 256, 256, 16
        $region24: #{vector_molora_forward.2} parent=19 // pred_fallthru
          _
      $region20: #{vector_molora_forward.2} parent=5 // pred_fallthru
        _
      %p160 = scmp.le.s32.totalorder 1, %s15
      %p161 = scmp.lt.s32.totalorder %s15, 3
      %p162 = pnand %p160, %p161
      %p163 = pneg %p162
      // Predicated region
      $region25: #{vector_molora_forward.2} parent=5 // pred_check
        _
      $region26: #{vector_molora_forward.2} parent=5 // pred_check_branch
        %165 = sbr.rel (%p162) target = $region28
      $region27: #{vector_molora_forward.2} parent=5 // pred_region
        %s166 = ssub.s32 %s15, 1
        %s167 = sand.u32 %s42, 1
        %s168 = scalar_lea.sflag [#allocation3], %s167
        %s169 = sand.u32 %s42, 1
        %s170 = smul.addr %s169, 32
        %s171 = scalar_lea.vmem [#allocation2], %s170
        // Predicated region
        $region29: #{vector_molora_forward.2} parent=27 // pred_check
          %p172 = pneg %p55
        $region30: #{vector_molora_forward.2} parent=27 // pred_check_branch
          %174 = sbr.rel (%p172) target = $region32
        $region31: #{vector_molora_forward.2} parent=27 // pred_region
          %175 = dma.done %s168, 512
        $region32: #{vector_molora_forward.2} parent=27 // pred_fallthru
          _
        // Predicated region
        $region33: #{vector_molora_forward.2} parent=27 // pred_check
          %p176 = pneg %p76
        $region34: #{vector_molora_forward.2} parent=27 // pred_check_branch
          %178 = sbr.rel (%p176) target = $region36
        $region35: #{vector_molora_forward.2} parent=27 // pred_region
          %179 = dma.done [#allocation6], 1024
        $region36: #{vector_molora_forward.2} parent=27 // pred_fallthru
          _
        %s180 = sand.u32 %s42, 1
        %s181 = scalar_lea.sflag [#allocation3], %s180
        %s182 = sand.u32 %s42, 1
        %s183 = smul.addr %s182, 32
        %s184 = scalar_lea.vmem [#allocation2], %s183
        %p185 = pneg %p55
        %p186 = pneg %p52
        %p187 = pneg %p76
        %p188 = pneg %p73
        %p189 = pneg %p104
        %p190 = pneg %p101
        %s191 = sand.u32 %s91, 1
        %s192 = scalar_lea.sflag [#allocation4], %s191
        %s193 = sand.u32 %s91, 1
        %s194 = smul.addr %s193, 128
        %s195 = scalar_lea.vmem [#allocation7], %s194
        %s196 = smul.u32 2, %s25
        %s197 = smul.u32 2, %s25
        %v198 = vld [vmem:[%s171] sm:$0xff]
        %v199 = vld [vmem:[%s171 + $0x8] sm:$0xff]
        %v200 = vld [vmem:[%s171 + $0x10] sm:$0xff]
        %v201 = vld [vmem:[%s171 + $0x18] sm:$0xff]
        %v202 = vld [vmem:[#allocation5] sm:$0xff]
        %v203 = vld [vmem:[#allocation5 + $0x8] sm:$0xff]
        %v204 = vld [vmem:[#allocation5 + $0x10] sm:$0xff]
        %v205 = vld [vmem:[#allocation5 + $0x18] sm:$0xff]
        %v206 = vld [vmem:[#allocation5 + $0x20] sm:$0xff]
        %v207 = vld [vmem:[#allocation5 + $0x28] sm:$0xff]
        %v208 = vld [vmem:[#allocation5 + $0x30] sm:$0xff]
        %v209 = vld [vmem:[#allocation5 + $0x38] sm:$0xff]
        %v210 = vlaneseq
        %v211 = vshrl.u32 %v210, 7
        %v212 = vsub.s32 0, %v211
        %v213 = vrot.slane %v202, %v212
        %v214 = vmul.f32 %v198, %v213
        %v215 = vmul.f32 %v200, %v213
        %v216 = vlaneseq
        %v217 = vshrl.u32 %v216, 7
        %v218 = vsub.s32 1, %v217
        %v219 = vrot.slane %v202, %v218
        %221 = vrot.lane.b32.xlu0 %v219, 32
        %v222 = vpop.permute.xlu0 %221
        %v224 = vmul.f32 %v198, %v222
        %v225 = vmul.f32 %v200, %v222
        %228 = vrot.lane.b32.xlu0 %v224, 96
        %v229 = vpop.permute.xlu0 %228
        %230 = vrot.lane.b32.xlu0 %v225, 96
        %v231 = vpop.permute.xlu0 %230
        %v234 = vadd.f32 %v214, %v229
        %v235 = vadd.f32 %v215, %v231
        %v236 = vlaneseq
        %v237 = vshrl.u32 %v236, 7
        %v238 = vsub.s32 2, %v237
        %v239 = vrot.slane %v202, %v238
        %241 = vrot.lane.b32.xlu0 %v239, 64
        %v242 = vpop.permute.xlu0 %241
        %v244 = vmul.f32 %v198, %v242
        %v245 = vmul.f32 %v200, %v242
        %248 = vrot.lane.b32.xlu0 %v244, 64
        %v249 = vpop.permute.xlu0 %248
        %250 = vrot.lane.b32.xlu0 %v245, 64
        %v251 = vpop.permute.xlu0 %250
        %v254 = vadd.f32 %v234, %v249
        %v255 = vadd.f32 %v235, %v251
        %v256 = vlaneseq
        %v257 = vshrl.u32 %v256, 7
        %v258 = vsub.s32 3, %v257
        %v259 = vrot.slane %v202, %v258
        %261 = vrot.lane.b32.xlu0 %v259, 96
        %v262 = vpop.permute.xlu0 %261
        %v264 = vmul.f32 %v198, %v262
        %v265 = vmul.f32 %v200, %v262
        %268 = vrot.lane.b32.xlu0 %v264, 32
        %v269 = vpop.permute.xlu0 %268
        %270 = vrot.lane.b32.xlu0 %v265, 32
        %v271 = vpop.permute.xlu0 %270
        %v274 = vadd.f32 %v254, %v269
        %v275 = vadd.f32 %v255, %v271
        %v276 = vlaneseq
        %v277 = vshrl.u32 %v276, 7
        %v278 = vsub.s32 4, %v277
        %v279 = vrot.slane %v202, %v278
        %v280 = vmul.f32 %v199, %v279
        %v281 = vmul.f32 %v201, %v279
        %v282 = vadd.f32 %v274, %v280
        %v283 = vadd.f32 %v275, %v281
        %v284 = vlaneseq
        %v285 = vshrl.u32 %v284, 7
        %v286 = vsub.s32 5, %v285
        %v287 = vrot.slane %v202, %v286
        %289 = vrot.lane.b32.xlu0 %v287, 32
        %v290 = vpop.permute.xlu0 %289
        %v292 = vmul.f32 %v199, %v290
        %v293 = vmul.f32 %v201, %v290
        %296 = vrot.lane.b32.xlu0 %v292, 96
        %v297 = vpop.permute.xlu0 %296
        %298 = vrot.lane.b32.xlu0 %v293, 96
        %v299 = vpop.permute.xlu0 %298
        %v302 = vadd.f32 %v282, %v297
        %v303 = vadd.f32 %v283, %v299
        %v304 = vlaneseq
        %v305 = vshrl.u32 %v304, 7
        %v306 = vsub.s32 6, %v305
        %v307 = vrot.slane %v202, %v306
        %309 = vrot.lane.b32.xlu0 %v307, 64
        %v310 = vpop.permute.xlu0 %309
        %v312 = vmul.f32 %v199, %v310
        %v313 = vmul.f32 %v201, %v310
        %316 = vrot.lane.b32.xlu0 %v312, 64
        %v317 = vpop.permute.xlu0 %316
        %318 = vrot.lane.b32.xlu0 %v313, 64
        %v319 = vpop.permute.xlu0 %318
        %v322 = vadd.f32 %v302, %v317
        %v323 = vadd.f32 %v303, %v319
        %v324 = vlaneseq
        %v325 = vshrl.u32 %v324, 7
        %v326 = vsub.s32 7, %v325
        %v327 = vrot.slane %v202, %v326
        %329 = vrot.lane.b32.xlu0 %v327, 96
        %v330 = vpop.permute.xlu0 %329
        %v332 = vmul.f32 %v199, %v330
        %v333 = vmul.f32 %v201, %v330
        %336 = vrot.lane.b32.xlu0 %v332, 32
        %v337 = vpop.permute.xlu0 %336
        %338 = vrot.lane.b32.xlu0 %v333, 32
        %v339 = vpop.permute.xlu0 %338
        %v342 = vadd.f32 %v322, %v337
        %v343 = vadd.f32 %v323, %v339
        %vm344 = vcmask 261120
        %345 = vst.msk [vmem:[%s195] sm:$0xff] %vm344, %v342
        %346 = vst.msk [vmem:[%s195 + $0x8] sm:$0xff] %vm344, %v343
        %v347 = vlaneseq
        %v348 = vshrl.u32 %v347, 7
        %v349 = vsub.s32 0, %v348
        %v350 = vrot.slane %v203, %v349
        %v351 = vmul.f32 %v198, %v350
        %v352 = vmul.f32 %v200, %v350
        %v353 = vlaneseq
        %v354 = vshrl.u32 %v353, 7
        %v355 = vsub.s32 1, %v354
        %v356 = vrot.slane %v203, %v355
        %358 = vrot.lane.b32.xlu0 %v356, 32
        %v359 = vpop.permute.xlu0 %358
        %v361 = vmul.f32 %v198, %v359
        %v362 = vmul.f32 %v200, %v359
        %365 = vrot.lane.b32.xlu0 %v361, 96
        %v366 = vpop.permute.xlu0 %365
        %367 = vrot.lane.b32.xlu0 %v362, 96
        %v368 = vpop.permute.xlu0 %367
        %v371 = vadd.f32 %v351, %v366
        %v372 = vadd.f32 %v352, %v368
        %v373 = vlaneseq
        %v374 = vshrl.u32 %v373, 7
        %v375 = vsub.s32 2, %v374
        %v376 = vrot.slane %v203, %v375
        %378 = vrot.lane.b32.xlu0 %v376, 64
        %v379 = vpop.permute.xlu0 %378
        %v381 = vmul.f32 %v198, %v379
        %v382 = vmul.f32 %v200, %v379
        %385 = vrot.lane.b32.xlu0 %v381, 64
        %v386 = vpop.permute.xlu0 %385
        %387 = vrot.lane.b32.xlu0 %v382, 64
        %v388 = vpop.permute.xlu0 %387
        %v391 = vadd.f32 %v371, %v386
        %v392 = vadd.f32 %v372, %v388
        %v393 = vlaneseq
        %v394 = vshrl.u32 %v393, 7
        %v395 = vsub.s32 3, %v394
        %v396 = vrot.slane %v203, %v395
        %398 = vrot.lane.b32.xlu0 %v396, 96
        %v399 = vpop.permute.xlu0 %398
        %v401 = vmul.f32 %v198, %v399
        %v402 = vmul.f32 %v200, %v399
        %405 = vrot.lane.b32.xlu0 %v401, 32
        %v406 = vpop.permute.xlu0 %405
        %407 = vrot.lane.b32.xlu0 %v402, 32
        %v408 = vpop.permute.xlu0 %407
        %v411 = vadd.f32 %v391, %v406
        %v412 = vadd.f32 %v392, %v408
        %v413 = vlaneseq
        %v414 = vshrl.u32 %v413, 7
        %v415 = vsub.s32 4, %v414
        %v416 = vrot.slane %v203, %v415
        %v417 = vmul.f32 %v199, %v416
        %v418 = vmul.f32 %v201, %v416
        %v419 = vadd.f32 %v411, %v417
        %v420 = vadd.f32 %v412, %v418
        %v421 = vlaneseq
        %v422 = vshrl.u32 %v421, 7
        %v423 = vsub.s32 5, %v422
        %v424 = vrot.slane %v203, %v423
        %426 = vrot.lane.b32.xlu0 %v424, 32
        %v427 = vpop.permute.xlu0 %426
        %v429 = vmul.f32 %v199, %v427
        %v430 = vmul.f32 %v201, %v427
        %433 = vrot.lane.b32.xlu0 %v429, 96
        %v434 = vpop.permute.xlu0 %433
        %435 = vrot.lane.b32.xlu0 %v430, 96
        %v436 = vpop.permute.xlu0 %435
        %v439 = vadd.f32 %v419, %v434
        %v440 = vadd.f32 %v420, %v436
        %v441 = vlaneseq
        %v442 = vshrl.u32 %v441, 7
        %v443 = vsub.s32 6, %v442
        %v444 = vrot.slane %v203, %v443
        %446 = vrot.lane.b32.xlu0 %v444, 64
        %v447 = vpop.permute.xlu0 %446
        %v449 = vmul.f32 %v199, %v447
        %v450 = vmul.f32 %v201, %v447
        %453 = vrot.lane.b32.xlu0 %v449, 64
        %v454 = vpop.permute.xlu0 %453
        %455 = vrot.lane.b32.xlu0 %v450, 64
        %v456 = vpop.permute.xlu0 %455
        %v459 = vadd.f32 %v439, %v454
        %v460 = vadd.f32 %v440, %v456
        %v461 = vlaneseq
        %v462 = vshrl.u32 %v461, 7
        %v463 = vsub.s32 7, %v462
        %v464 = vrot.slane %v203, %v463
        %466 = vrot.lane.b32.xlu0 %v464, 96
        %v467 = vpop.permute.xlu0 %466
        %v469 = vmul.f32 %v199, %v467
        %v470 = vmul.f32 %v201, %v467
        %473 = vrot.lane.b32.xlu0 %v469, 32
        %v474 = vpop.permute.xlu0 %473
        %475 = vrot.lane.b32.xlu0 %v470, 32
        %v476 = vpop.permute.xlu0 %475
        %v479 = vadd.f32 %v459, %v474
        %v480 = vadd.f32 %v460, %v476
        %s481 = scalar_lea.vmem %s195, 16 [#allocation7]
        %482 = vst.msk [vmem:[%s481] sm:$0xff] %vm344, %v479
        %483 = vst.msk [vmem:[%s481 + $0x8] sm:$0xff] %vm344, %v480
        %v484 = vlaneseq
        %v485 = vshrl.u32 %v484, 7
        %v486 = vsub.s32 0, %v485
        %v487 = vrot.slane %v204, %v486
        %v488 = vmul.f32 %v198, %v487
        %v489 = vmul.f32 %v200, %v487
        %v490 = vlaneseq
        %v491 = vshrl.u32 %v490, 7
        %v492 = vsub.s32 1, %v491
        %v493 = vrot.slane %v204, %v492
        %495 = vrot.lane.b32.xlu0 %v493, 32
        %v496 = vpop.permute.xlu0 %495
        %v498 = vmul.f32 %v198, %v496
        %v499 = vmul.f32 %v200, %v496
        %502 = vrot.lane.b32.xlu0 %v498, 96
        %v503 = vpop.permute.xlu0 %502
        %504 = vrot.lane.b32.xlu0 %v499, 96
        %v505 = vpop.permute.xlu0 %504
        %v508 = vadd.f32 %v488, %v503
        %v509 = vadd.f32 %v489, %v505
        %v510 = vlaneseq
        %v511 = vshrl.u32 %v510, 7
        %v512 = vsub.s32 2, %v511
        %v513 = vrot.slane %v204, %v512
        %515 = vrot.lane.b32.xlu0 %v513, 64
        %v516 = vpop.permute.xlu0 %515
        %v518 = vmul.f32 %v198, %v516
        %v519 = vmul.f32 %v200, %v516
        %522 = vrot.lane.b32.xlu0 %v518, 64
        %v523 = vpop.permute.xlu0 %522
        %524 = vrot.lane.b32.xlu0 %v519, 64
        %v525 = vpop.permute.xlu0 %524
        %v528 = vadd.f32 %v508, %v523
        %v529 = vadd.f32 %v509, %v525
        %v530 = vlaneseq
        %v531 = vshrl.u32 %v530, 7
        %v532 = vsub.s32 3, %v531
        %v533 = vrot.slane %v204, %v532
        %535 = vrot.lane.b32.xlu0 %v533, 96
        %v536 = vpop.permute.xlu0 %535
        %v538 = vmul.f32 %v198, %v536
        %v539 = vmul.f32 %v200, %v536
        %542 = vrot.lane.b32.xlu0 %v538, 32
        %v543 = vpop.permute.xlu0 %542
        %544 = vrot.lane.b32.xlu0 %v539, 32
        %v545 = vpop.permute.xlu0 %544
        %v548 = vadd.f32 %v528, %v543
        %v549 = vadd.f32 %v529, %v545
        %v550 = vlaneseq
        %v551 = vshrl.u32 %v550, 7
        %v552 = vsub.s32 4, %v551
        %v553 = vrot.slane %v204, %v552
        %v554 = vmul.f32 %v199, %v553
        %v555 = vmul.f32 %v201, %v553
        %v556 = vadd.f32 %v548, %v554
        %v557 = vadd.f32 %v549, %v555
        %v558 = vlaneseq
        %v559 = vshrl.u32 %v558, 7
        %v560 = vsub.s32 5, %v559
        %v561 = vrot.slane %v204, %v560
        %563 = vrot.lane.b32.xlu0 %v561, 32
        %v564 = vpop.permute.xlu0 %563
        %v566 = vmul.f32 %v199, %v564
        %v567 = vmul.f32 %v201, %v564
        %570 = vrot.lane.b32.xlu0 %v566, 96
        %v571 = vpop.permute.xlu0 %570
        %572 = vrot.lane.b32.xlu0 %v567, 96
        %v573 = vpop.permute.xlu0 %572
        %v576 = vadd.f32 %v556, %v571
        %v577 = vadd.f32 %v557, %v573
        %v578 = vlaneseq
        %v579 = vshrl.u32 %v578, 7
        %v580 = vsub.s32 6, %v579
        %v581 = vrot.slane %v204, %v580
        %583 = vrot.lane.b32.xlu0 %v581, 64
        %v584 = vpop.permute.xlu0 %583
        %v586 = vmul.f32 %v199, %v584
        %v587 = vmul.f32 %v201, %v584
        %590 = vrot.lane.b32.xlu0 %v586, 64
        %v591 = vpop.permute.xlu0 %590
        %592 = vrot.lane.b32.xlu0 %v587, 64
        %v593 = vpop.permute.xlu0 %592
        %v596 = vadd.f32 %v576, %v591
        %v597 = vadd.f32 %v577, %v593
        %v598 = vlaneseq
        %v599 = vshrl.u32 %v598, 7
        %v600 = vsub.s32 7, %v599
        %v601 = vrot.slane %v204, %v600
        %603 = vrot.lane.b32.xlu0 %v601, 96
        %v604 = vpop.permute.xlu0 %603
        %v606 = vmul.f32 %v199, %v604
        %v607 = vmul.f32 %v201, %v604
        %610 = vrot.lane.b32.xlu0 %v606, 32
        %v611 = vpop.permute.xlu0 %610
        %612 = vrot.lane.b32.xlu0 %v607, 32
        %v613 = vpop.permute.xlu0 %612
        %v616 = vadd.f32 %v596, %v611
        %v617 = vadd.f32 %v597, %v613
        %s618 = scalar_lea.vmem %s195, 32 [#allocation7]
        %619 = vst.msk [vmem:[%s618] sm:$0xff] %vm344, %v616
        %620 = vst.msk [vmem:[%s618 + $0x8] sm:$0xff] %vm344, %v617
        %v621 = vlaneseq
        %v622 = vshrl.u32 %v621, 7
        %v623 = vsub.s32 0, %v622
        %v624 = vrot.slane %v205, %v623
        %v625 = vmul.f32 %v198, %v624
        %v626 = vmul.f32 %v200, %v624
        %v627 = vlaneseq
        %v628 = vshrl.u32 %v627, 7
        %v629 = vsub.s32 1, %v628
        %v630 = vrot.slane %v205, %v629
        %632 = vrot.lane.b32.xlu0 %v630, 32
        %v633 = vpop.permute.xlu0 %632
        %v635 = vmul.f32 %v198, %v633
        %v636 = vmul.f32 %v200, %v633
        %639 = vrot.lane.b32.xlu0 %v635, 96
        %v640 = vpop.permute.xlu0 %639
        %641 = vrot.lane.b32.xlu0 %v636, 96
        %v642 = vpop.permute.xlu0 %641
        %v645 = vadd.f32 %v625, %v640
        %v646 = vadd.f32 %v626, %v642
        %v647 = vlaneseq
        %v648 = vshrl.u32 %v647, 7
        %v649 = vsub.s32 2, %v648
        %v650 = vrot.slane %v205, %v649
        %652 = vrot.lane.b32.xlu0 %v650, 64
        %v653 = vpop.permute.xlu0 %652
        %v655 = vmul.f32 %v198, %v653
        %v656 = vmul.f32 %v200, %v653
        %659 = vrot.lane.b32.xlu0 %v655, 64
        %v660 = vpop.permute.xlu0 %659
        %661 = vrot.lane.b32.xlu0 %v656, 64
        %v662 = vpop.permute.xlu0 %661
        %v665 = vadd.f32 %v645, %v660
        %v666 = vadd.f32 %v646, %v662
        %v667 = vlaneseq
        %v668 = vshrl.u32 %v667, 7
        %v669 = vsub.s32 3, %v668
        %v670 = vrot.slane %v205, %v669
        %672 = vrot.lane.b32.xlu0 %v670, 96
        %v673 = vpop.permute.xlu0 %672
        %v675 = vmul.f32 %v198, %v673
        %v676 = vmul.f32 %v200, %v673
        %679 = vrot.lane.b32.xlu0 %v675, 32
        %v680 = vpop.permute.xlu0 %679
        %681 = vrot.lane.b32.xlu0 %v676, 32
        %v682 = vpop.permute.xlu0 %681
        %v685 = vadd.f32 %v665, %v680
        %v686 = vadd.f32 %v666, %v682
        %v687 = vlaneseq
        %v688 = vshrl.u32 %v687, 7
        %v689 = vsub.s32 4, %v688
        %v690 = vrot.slane %v205, %v689
        %v691 = vmul.f32 %v199, %v690
        %v692 = vmul.f32 %v201, %v690
        %v693 = vadd.f32 %v685, %v691
        %v694 = vadd.f32 %v686, %v692
        %v695 = vlaneseq
        %v696 = vshrl.u32 %v695, 7
        %v697 = vsub.s32 5, %v696
        %v698 = vrot.slane %v205, %v697
        %700 = vrot.lane.b32.xlu0 %v698, 32
        %v701 = vpop.permute.xlu0 %700
        %v703 = vmul.f32 %v199, %v701
        %v704 = vmul.f32 %v201, %v701
        %707 = vrot.lane.b32.xlu0 %v703, 96
        %v708 = vpop.permute.xlu0 %707
        %709 = vrot.lane.b32.xlu0 %v704, 96
        %v710 = vpop.permute.xlu0 %709
        %v713 = vadd.f32 %v693, %v708
        %v714 = vadd.f32 %v694, %v710
        %v715 = vlaneseq
        %v716 = vshrl.u32 %v715, 7
        %v717 = vsub.s32 6, %v716
        %v718 = vrot.slane %v205, %v717
        %720 = vrot.lane.b32.xlu0 %v718, 64
        %v721 = vpop.permute.xlu0 %720
        %v723 = vmul.f32 %v199, %v721
        %v724 = vmul.f32 %v201, %v721
        %727 = vrot.lane.b32.xlu0 %v723, 64
        %v728 = vpop.permute.xlu0 %727
        %729 = vrot.lane.b32.xlu0 %v724, 64
        %v730 = vpop.permute.xlu0 %729
        %v733 = vadd.f32 %v713, %v728
        %v734 = vadd.f32 %v714, %v730
        %v735 = vlaneseq
        %v736 = vshrl.u32 %v735, 7
        %v737 = vsub.s32 7, %v736
        %v738 = vrot.slane %v205, %v737
        %740 = vrot.lane.b32.xlu0 %v738, 96
        %v741 = vpop.permute.xlu0 %740
        %v743 = vmul.f32 %v199, %v741
        %v744 = vmul.f32 %v201, %v741
        %747 = vrot.lane.b32.xlu0 %v743, 32
        %v748 = vpop.permute.xlu0 %747
        %749 = vrot.lane.b32.xlu0 %v744, 32
        %v750 = vpop.permute.xlu0 %749
        %v753 = vadd.f32 %v733, %v748
        %v754 = vadd.f32 %v734, %v750
        %s755 = scalar_lea.vmem %s195, 48 [#allocation7]
        %756 = vst.msk [vmem:[%s755] sm:$0xff] %vm344, %v753
        %757 = vst.msk [vmem:[%s755 + $0x8] sm:$0xff] %vm344, %v754
        %v758 = vlaneseq
        %v759 = vshrl.u32 %v758, 7
        %v760 = vsub.s32 0, %v759
        %v761 = vrot.slane %v206, %v760
        %v762 = vmul.f32 %v198, %v761
        %v763 = vmul.f32 %v200, %v761
        %v764 = vlaneseq
        %v765 = vshrl.u32 %v764, 7
        %v766 = vsub.s32 1, %v765
        %v767 = vrot.slane %v206, %v766
        %769 = vrot.lane.b32.xlu0 %v767, 32
        %v770 = vpop.permute.xlu0 %769
        %v772 = vmul.f32 %v198, %v770
        %v773 = vmul.f32 %v200, %v770
        %776 = vrot.lane.b32.xlu0 %v772, 96
        %v777 = vpop.permute.xlu0 %776
        %778 = vrot.lane.b32.xlu0 %v773, 96
        %v779 = vpop.permute.xlu0 %778
        %v782 = vadd.f32 %v762, %v777
        %v783 = vadd.f32 %v763, %v779
        %v784 = vlaneseq
        %v785 = vshrl.u32 %v784, 7
        %v786 = vsub.s32 2, %v785
        %v787 = vrot.slane %v206, %v786
        %789 = vrot.lane.b32.xlu0 %v787, 64
        %v790 = vpop.permute.xlu0 %789
        %v792 = vmul.f32 %v198, %v790
        %v793 = vmul.f32 %v200, %v790
        %796 = vrot.lane.b32.xlu0 %v792, 64
        %v797 = vpop.permute.xlu0 %796
        %798 = vrot.lane.b32.xlu0 %v793, 64
        %v799 = vpop.permute.xlu0 %798
        %v802 = vadd.f32 %v782, %v797
        %v803 = vadd.f32 %v783, %v799
        %v804 = vlaneseq
        %v805 = vshrl.u32 %v804, 7
        %v806 = vsub.s32 3, %v805
        %v807 = vrot.slane %v206, %v806
        %809 = vrot.lane.b32.xlu0 %v807, 96
        %v810 = vpop.permute.xlu0 %809
        %v812 = vmul.f32 %v198, %v810
        %v813 = vmul.f32 %v200, %v810
        %816 = vrot.lane.b32.xlu0 %v812, 32
        %v817 = vpop.permute.xlu0 %816
        %818 = vrot.lane.b32.xlu0 %v813, 32
        %v819 = vpop.permute.xlu0 %818
        %v822 = vadd.f32 %v802, %v817
        %v823 = vadd.f32 %v803, %v819
        %v824 = vlaneseq
        %v825 = vshrl.u32 %v824, 7
        %v826 = vsub.s32 4, %v825
        %v827 = vrot.slane %v206, %v826
        %v828 = vmul.f32 %v199, %v827
        %v829 = vmul.f32 %v201, %v827
        %v830 = vadd.f32 %v822, %v828
        %v831 = vadd.f32 %v823, %v829
        %v832 = vlaneseq
        %v833 = vshrl.u32 %v832, 7
        %v834 = vsub.s32 5, %v833
        %v835 = vrot.slane %v206, %v834
        %837 = vrot.lane.b32.xlu0 %v835, 32
        %v838 = vpop.permute.xlu0 %837
        %v840 = vmul.f32 %v199, %v838
        %v841 = vmul.f32 %v201, %v838
        %844 = vrot.lane.b32.xlu0 %v840, 96
        %v845 = vpop.permute.xlu0 %844
        %846 = vrot.lane.b32.xlu0 %v841, 96
        %v847 = vpop.permute.xlu0 %846
        %v850 = vadd.f32 %v830, %v845
        %v851 = vadd.f32 %v831, %v847
        %v852 = vlaneseq
        %v853 = vshrl.u32 %v852, 7
        %v854 = vsub.s32 6, %v853
        %v855 = vrot.slane %v206, %v854
        %857 = vrot.lane.b32.xlu0 %v855, 64
        %v858 = vpop.permute.xlu0 %857
        %v860 = vmul.f32 %v199, %v858
        %v861 = vmul.f32 %v201, %v858
        %864 = vrot.lane.b32.xlu0 %v860, 64
        %v865 = vpop.permute.xlu0 %864
        %866 = vrot.lane.b32.xlu0 %v861, 64
        %v867 = vpop.permute.xlu0 %866
        %v870 = vadd.f32 %v850, %v865
        %v871 = vadd.f32 %v851, %v867
        %v872 = vlaneseq
        %v873 = vshrl.u32 %v872, 7
        %v874 = vsub.s32 7, %v873
        %v875 = vrot.slane %v206, %v874
        %877 = vrot.lane.b32.xlu0 %v875, 96
        %v878 = vpop.permute.xlu0 %877
        %v880 = vmul.f32 %v199, %v878
        %v881 = vmul.f32 %v201, %v878
        %884 = vrot.lane.b32.xlu0 %v880, 32
        %v885 = vpop.permute.xlu0 %884
        %886 = vrot.lane.b32.xlu0 %v881, 32
        %v887 = vpop.permute.xlu0 %886
        %v890 = vadd.f32 %v870, %v885
        %v891 = vadd.f32 %v871, %v887
        %s892 = scalar_lea.vmem %s195, 64 [#allocation7]
        %893 = vst.msk [vmem:[%s892] sm:$0xff] %vm344, %v890
        %894 = vst.msk [vmem:[%s892 + $0x8] sm:$0xff] %vm344, %v891
        %v895 = vlaneseq
        %v896 = vshrl.u32 %v895, 7
        %v897 = vsub.s32 0, %v896
        %v898 = vrot.slane %v207, %v897
        %v899 = vmul.f32 %v198, %v898
        %v900 = vmul.f32 %v200, %v898
        %v901 = vlaneseq
        %v902 = vshrl.u32 %v901, 7
        %v903 = vsub.s32 1, %v902
        %v904 = vrot.slane %v207, %v903
        %906 = vrot.lane.b32.xlu0 %v904, 32
        %v907 = vpop.permute.xlu0 %906
        %v909 = vmul.f32 %v198, %v907
        %v910 = vmul.f32 %v200, %v907
        %913 = vrot.lane.b32.xlu0 %v909, 96
        %v914 = vpop.permute.xlu0 %913
        %915 = vrot.lane.b32.xlu0 %v910, 96
        %v916 = vpop.permute.xlu0 %915
        %v919 = vadd.f32 %v899, %v914
        %v920 = vadd.f32 %v900, %v916
        %v921 = vlaneseq
        %v922 = vshrl.u32 %v921, 7
        %v923 = vsub.s32 2, %v922
        %v924 = vrot.slane %v207, %v923
        %926 = vrot.lane.b32.xlu0 %v924, 64
        %v927 = vpop.permute.xlu0 %926
        %v929 = vmul.f32 %v198, %v927
        %v930 = vmul.f32 %v200, %v927
        %933 = vrot.lane.b32.xlu0 %v929, 64
        %v934 = vpop.permute.xlu0 %933
        %935 = vrot.lane.b32.xlu0 %v930, 64
        %v936 = vpop.permute.xlu0 %935
        %v939 = vadd.f32 %v919, %v934
        %v940 = vadd.f32 %v920, %v936
        %v941 = vlaneseq
        %v942 = vshrl.u32 %v941, 7
        %v943 = vsub.s32 3, %v942
        %v944 = vrot.slane %v207, %v943
        %946 = vrot.lane.b32.xlu0 %v944, 96
        %v947 = vpop.permute.xlu0 %946
        %v949 = vmul.f32 %v198, %v947
        %v950 = vmul.f32 %v200, %v947
        %953 = vrot.lane.b32.xlu0 %v949, 32
        %v954 = vpop.permute.xlu0 %953
        %955 = vrot.lane.b32.xlu0 %v950, 32
        %v956 = vpop.permute.xlu0 %955
        %v959 = vadd.f32 %v939, %v954
        %v960 = vadd.f32 %v940, %v956
        %v961 = vlaneseq
        %v962 = vshrl.u32 %v961, 7
        %v963 = vsub.s32 4, %v962
        %v964 = vrot.slane %v207, %v963
        %v965 = vmul.f32 %v199, %v964
        %v966 = vmul.f32 %v201, %v964
        %v967 = vadd.f32 %v959, %v965
        %v968 = vadd.f32 %v960, %v966
        %v969 = vlaneseq
        %v970 = vshrl.u32 %v969, 7
        %v971 = vsub.s32 5, %v970
        %v972 = vrot.slane %v207, %v971
        %974 = vrot.lane.b32.xlu0 %v972, 32
        %v975 = vpop.permute.xlu0 %974
        %v977 = vmul.f32 %v199, %v975
        %v978 = vmul.f32 %v201, %v975
        %981 = vrot.lane.b32.xlu0 %v977, 96
        %v982 = vpop.permute.xlu0 %981
        %983 = vrot.lane.b32.xlu0 %v978, 96
        %v984 = vpop.permute.xlu0 %983
        %v987 = vadd.f32 %v967, %v982
        %v988 = vadd.f32 %v968, %v984
        %v989 = vlaneseq
        %v990 = vshrl.u32 %v989, 7
        %v991 = vsub.s32 6, %v990
        %v992 = vrot.slane %v207, %v991
        %994 = vrot.lane.b32.xlu0 %v992, 64
        %v995 = vpop.permute.xlu0 %994
        %v997 = vmul.f32 %v199, %v995
        %v998 = vmul.f32 %v201, %v995
        %1001 = vrot.lane.b32.xlu0 %v997, 64
        %v1002 = vpop.permute.xlu0 %1001
        %1003 = vrot.lane.b32.xlu0 %v998, 64
        %v1004 = vpop.permute.xlu0 %1003
        %v1007 = vadd.f32 %v987, %v1002
        %v1008 = vadd.f32 %v988, %v1004
        %v1009 = vlaneseq
        %v1010 = vshrl.u32 %v1009, 7
        %v1011 = vsub.s32 7, %v1010
        %v1012 = vrot.slane %v207, %v1011
        %1014 = vrot.lane.b32.xlu0 %v1012, 96
        %v1015 = vpop.permute.xlu0 %1014
        %v1017 = vmul.f32 %v199, %v1015
        %v1018 = vmul.f32 %v201, %v1015
        %1021 = vrot.lane.b32.xlu0 %v1017, 32
        %v1022 = vpop.permute.xlu0 %1021
        %1023 = vrot.lane.b32.xlu0 %v1018, 32
        %v1024 = vpop.permute.xlu0 %1023
        %v1027 = vadd.f32 %v1007, %v1022
        %v1028 = vadd.f32 %v1008, %v1024
        %s1029 = scalar_lea.vmem %s195, 80 [#allocation7]
        %1030 = vst.msk [vmem:[%s1029] sm:$0xff] %vm344, %v1027
        %1031 = vst.msk [vmem:[%s1029 + $0x8] sm:$0xff] %vm344, %v1028
        %v1032 = vlaneseq
        %v1033 = vshrl.u32 %v1032, 7
        %v1034 = vsub.s32 0, %v1033
        %v1035 = vrot.slane %v208, %v1034
        %v1036 = vmul.f32 %v198, %v1035
        %v1037 = vmul.f32 %v200, %v1035
        %v1038 = vlaneseq
        %v1039 = vshrl.u32 %v1038, 7
        %v1040 = vsub.s32 1, %v1039
        %v1041 = vrot.slane %v208, %v1040
        %1043 = vrot.lane.b32.xlu0 %v1041, 32
        %v1044 = vpop.permute.xlu0 %1043
        %v1046 = vmul.f32 %v198, %v1044
        %v1047 = vmul.f32 %v200, %v1044
        %1050 = vrot.lane.b32.xlu0 %v1046, 96
        %v1051 = vpop.permute.xlu0 %1050
        %1052 = vrot.lane.b32.xlu0 %v1047, 96
        %v1053 = vpop.permute.xlu0 %1052
        %v1056 = vadd.f32 %v1036, %v1051
        %v1057 = vadd.f32 %v1037, %v1053
        %v1058 = vlaneseq
        %v1059 = vshrl.u32 %v1058, 7
        %v1060 = vsub.s32 2, %v1059
        %v1061 = vrot.slane %v208, %v1060
        %1063 = vrot.lane.b32.xlu0 %v1061, 64
        %v1064 = vpop.permute.xlu0 %1063
        %v1066 = vmul.f32 %v198, %v1064
        %v1067 = vmul.f32 %v200, %v1064
        %1070 = vrot.lane.b32.xlu0 %v1066, 64
        %v1071 = vpop.permute.xlu0 %1070
        %1072 = vrot.lane.b32.xlu0 %v1067, 64
        %v1073 = vpop.permute.xlu0 %1072
        %v1076 = vadd.f32 %v1056, %v1071
        %v1077 = vadd.f32 %v1057, %v1073
        %v1078 = vlaneseq
        %v1079 = vshrl.u32 %v1078, 7
        %v1080 = vsub.s32 3, %v1079
        %v1081 = vrot.slane %v208, %v1080
        %1083 = vrot.lane.b32.xlu0 %v1081, 96
        %v1084 = vpop.permute.xlu0 %1083
        %v1086 = vmul.f32 %v198, %v1084
        %v1087 = vmul.f32 %v200, %v1084
        %1090 = vrot.lane.b32.xlu0 %v1086, 32
        %v1091 = vpop.permute.xlu0 %1090
        %1092 = vrot.lane.b32.xlu0 %v1087, 32
        %v1093 = vpop.permute.xlu0 %1092
        %v1096 = vadd.f32 %v1076, %v1091
        %v1097 = vadd.f32 %v1077, %v1093
        %v1098 = vlaneseq
        %v1099 = vshrl.u32 %v1098, 7
        %v1100 = vsub.s32 4, %v1099
        %v1101 = vrot.slane %v208, %v1100
        %v1102 = vmul.f32 %v199, %v1101
        %v1103 = vmul.f32 %v201, %v1101
        %v1104 = vadd.f32 %v1096, %v1102
        %v1105 = vadd.f32 %v1097, %v1103
        %v1106 = vlaneseq
        %v1107 = vshrl.u32 %v1106, 7
        %v1108 = vsub.s32 5, %v1107
        %v1109 = vrot.slane %v208, %v1108
        %1111 = vrot.lane.b32.xlu0 %v1109, 32
        %v1112 = vpop.permute.xlu0 %1111
        %v1114 = vmul.f32 %v199, %v1112
        %v1115 = vmul.f32 %v201, %v1112
        %1118 = vrot.lane.b32.xlu0 %v1114, 96
        %v1119 = vpop.permute.xlu0 %1118
        %1120 = vrot.lane.b32.xlu0 %v1115, 96
        %v1121 = vpop.permute.xlu0 %1120
        %v1124 = vadd.f32 %v1104, %v1119
        %v1125 = vadd.f32 %v1105, %v1121
        %v1126 = vlaneseq
        %v1127 = vshrl.u32 %v1126, 7
        %v1128 = vsub.s32 6, %v1127
        %v1129 = vrot.slane %v208, %v1128
        %1131 = vrot.lane.b32.xlu0 %v1129, 64
        %v1132 = vpop.permute.xlu0 %1131
        %v1134 = vmul.f32 %v199, %v1132
        %v1135 = vmul.f32 %v201, %v1132
        %1138 = vrot.lane.b32.xlu0 %v1134, 64
        %v1139 = vpop.permute.xlu0 %1138
        %1140 = vrot.lane.b32.xlu0 %v1135, 64
        %v1141 = vpop.permute.xlu0 %1140
        %v1144 = vadd.f32 %v1124, %v1139
        %v1145 = vadd.f32 %v1125, %v1141
        %v1146 = vlaneseq
        %v1147 = vshrl.u32 %v1146, 7
        %v1148 = vsub.s32 7, %v1147
        %v1149 = vrot.slane %v208, %v1148
        %1151 = vrot.lane.b32.xlu0 %v1149, 96
        %v1152 = vpop.permute.xlu0 %1151
        %v1154 = vmul.f32 %v199, %v1152
        %v1155 = vmul.f32 %v201, %v1152
        %1158 = vrot.lane.b32.xlu0 %v1154, 32
        %v1159 = vpop.permute.xlu0 %1158
        %1160 = vrot.lane.b32.xlu0 %v1155, 32
        %v1161 = vpop.permute.xlu0 %1160
        %v1164 = vadd.f32 %v1144, %v1159
        %v1165 = vadd.f32 %v1145, %v1161
        %s1166 = scalar_lea.vmem %s195, 96 [#allocation7]
        %1167 = vst.msk [vmem:[%s1166] sm:$0xff] %vm344, %v1164
        %1168 = vst.msk [vmem:[%s1166 + $0x8] sm:$0xff] %vm344, %v1165
        %v1169 = vlaneseq
        %v1170 = vshrl.u32 %v1169, 7
        %v1171 = vsub.s32 0, %v1170
        %v1172 = vrot.slane %v209, %v1171
        %v1173 = vmul.f32 %v198, %v1172
        %v1174 = vmul.f32 %v200, %v1172
        %v1175 = vlaneseq
        %v1176 = vshrl.u32 %v1175, 7
        %v1177 = vsub.s32 1, %v1176
        %v1178 = vrot.slane %v209, %v1177
        %1180 = vrot.lane.b32.xlu0 %v1178, 32
        %v1181 = vpop.permute.xlu0 %1180
        %v1183 = vmul.f32 %v198, %v1181
        %v1184 = vmul.f32 %v200, %v1181
        %1187 = vrot.lane.b32.xlu0 %v1183, 96
        %v1188 = vpop.permute.xlu0 %1187
        %1189 = vrot.lane.b32.xlu0 %v1184, 96
        %v1190 = vpop.permute.xlu0 %1189
        %v1193 = vadd.f32 %v1173, %v1188
        %v1194 = vadd.f32 %v1174, %v1190
        %v1195 = vlaneseq
        %v1196 = vshrl.u32 %v1195, 7
        %v1197 = vsub.s32 2, %v1196
        %v1198 = vrot.slane %v209, %v1197
        %1200 = vrot.lane.b32.xlu0 %v1198, 64
        %v1201 = vpop.permute.xlu0 %1200
        %v1203 = vmul.f32 %v198, %v1201
        %v1204 = vmul.f32 %v200, %v1201
        %1207 = vrot.lane.b32.xlu0 %v1203, 64
        %v1208 = vpop.permute.xlu0 %1207
        %1209 = vrot.lane.b32.xlu0 %v1204, 64
        %v1210 = vpop.permute.xlu0 %1209
        %v1213 = vadd.f32 %v1193, %v1208
        %v1214 = vadd.f32 %v1194, %v1210
        %v1215 = vlaneseq
        %v1216 = vshrl.u32 %v1215, 7
        %v1217 = vsub.s32 3, %v1216
        %v1218 = vrot.slane %v209, %v1217
        %1220 = vrot.lane.b32.xlu0 %v1218, 96
        %v1221 = vpop.permute.xlu0 %1220
        %v1223 = vmul.f32 %v198, %v1221
        %v1224 = vmul.f32 %v200, %v1221
        %1227 = vrot.lane.b32.xlu0 %v1223, 32
        %v1228 = vpop.permute.xlu0 %1227
        %1229 = vrot.lane.b32.xlu0 %v1224, 32
        %v1230 = vpop.permute.xlu0 %1229
        %v1233 = vadd.f32 %v1213, %v1228
        %v1234 = vadd.f32 %v1214, %v1230
        %v1235 = vlaneseq
        %v1236 = vshrl.u32 %v1235, 7
        %v1237 = vsub.s32 4, %v1236
        %v1238 = vrot.slane %v209, %v1237
        %v1239 = vmul.f32 %v199, %v1238
        %v1240 = vmul.f32 %v201, %v1238
        %v1241 = vadd.f32 %v1233, %v1239
        %v1242 = vadd.f32 %v1234, %v1240
        %v1243 = vlaneseq
        %v1244 = vshrl.u32 %v1243, 7
        %v1245 = vsub.s32 5, %v1244
        %v1246 = vrot.slane %v209, %v1245
        %1248 = vrot.lane.b32.xlu0 %v1246, 32
        %v1249 = vpop.permute.xlu0 %1248
        %v1251 = vmul.f32 %v199, %v1249
        %v1252 = vmul.f32 %v201, %v1249
        %1255 = vrot.lane.b32.xlu0 %v1251, 96
        %v1256 = vpop.permute.xlu0 %1255
        %1257 = vrot.lane.b32.xlu0 %v1252, 96
        %v1258 = vpop.permute.xlu0 %1257
        %v1261 = vadd.f32 %v1241, %v1256
        %v1262 = vadd.f32 %v1242, %v1258
        %v1263 = vlaneseq
        %v1264 = vshrl.u32 %v1263, 7
        %v1265 = vsub.s32 6, %v1264
        %v1266 = vrot.slane %v209, %v1265
        %1268 = vrot.lane.b32.xlu0 %v1266, 64
        %v1269 = vpop.permute.xlu0 %1268
        %v1271 = vmul.f32 %v199, %v1269
        %v1272 = vmul.f32 %v201, %v1269
        %1275 = vrot.lane.b32.xlu0 %v1271, 64
        %v1276 = vpop.permute.xlu0 %1275
        %1277 = vrot.lane.b32.xlu0 %v1272, 64
        %v1278 = vpop.permute.xlu0 %1277
        %v1281 = vadd.f32 %v1261, %v1276
        %v1282 = vadd.f32 %v1262, %v1278
        %v1283 = vlaneseq
        %v1284 = vshrl.u32 %v1283, 7
        %v1285 = vsub.s32 7, %v1284
        %v1286 = vrot.slane %v209, %v1285
        %1288 = vrot.lane.b32.xlu0 %v1286, 96
        %v1289 = vpop.permute.xlu0 %1288
        %v1291 = vmul.f32 %v199, %v1289
        %v1292 = vmul.f32 %v201, %v1289
        %1295 = vrot.lane.b32.xlu0 %v1291, 32
        %v1296 = vpop.permute.xlu0 %1295
        %1297 = vrot.lane.b32.xlu0 %v1292, 32
        %v1298 = vpop.permute.xlu0 %1297
        %v1301 = vadd.f32 %v1281, %v1296
        %v1302 = vadd.f32 %v1282, %v1298
        %s1303 = scalar_lea.vmem %s195, 112 [#allocation7]
        %1304 = vst.msk [vmem:[%s1303] sm:$0xff] %vm344, %v1301
        %1305 = vst.msk [vmem:[%s1303 + $0x8] sm:$0xff] %vm344, %v1302
        %s1306 = sand.u32 %s91, 1
        %s1307 = scalar_lea.sflag [#allocation4], %s1306
        %s1308 = sand.u32 %s91, 1
        %s1309 = smul.addr %s1308, 128
        %s1310 = scalar_lea.vmem [#allocation7], %s1309
        // Predicated region
        $region37: #{vector_molora_forward.2} parent=27 // pred_check
          %p1311 = pneg %p101
        $region38: #{vector_molora_forward.2} parent=27 // pred_check_branch
          %1313 = sbr.rel (%p1311) target = $region40
        $region39: #{vector_molora_forward.2} parent=27 // pred_region
          %s1314 = smul.u32 2, %s25
          %s1316 = ssub.s32 2048, 2048
          %1317 = vsyncadd %s1307, %s1316
          %s1318 = smul.addr %s24, 16
          %s1319 = sadd.s32 %s1314, %s1318
          %s1320 = smul.addr %s1319, 128
          %s1321 = scalar_lea.hbm %s2, %s1320
          %s1322 = sshll.u32 %s1310, 4
          %s1323 = int_to_ptr.vmem [resolvable:$true] %s1322
          %1328 = dma.vmem_to_hbm [thread:$0]  %s1323, 2048, %s1321, %s1307, 128, 128, 8
        $region40: #{vector_molora_forward.2} parent=27 // pred_fallthru
          _
      $region28: #{vector_molora_forward.2} parent=5 // pred_fallthru
        _
      %p1329 = scmp.le.s32.totalorder 2, %s15
      // Predicated region
      $region41: #{vector_molora_forward.2} parent=5 // pred_check
        %p1330 = pneg %p1329
      $region42: #{vector_molora_forward.2} parent=5 // pred_check_branch
        %1332 = sbr.rel (%p1330) target = $region44
      $region43: #{vector_molora_forward.2} parent=5 // pred_region
        %s1333 = ssub.s32 %s15, 2
        // Predicated region
        $region45: #{vector_molora_forward.2} parent=43 // pred_check
          %p1334 = pneg %p107
        $region46: #{vector_molora_forward.2} parent=43 // pred_check_branch
          %1336 = sbr.rel (%p1334) target = $region48
        $region47: #{vector_molora_forward.2} parent=43 // pred_region
          %s1337 = sand.u32 %s92, 1
          %s1338 = scalar_lea.sflag [#allocation4], %s1337
          %s1339 = sand.u32 %s92, 1
          %s1340 = smul.addr %s1339, 128
          %s1341 = scalar_lea.vmem [#allocation7], %s1340
          %1342 = dma.done %s1338, 2048
        $region48: #{vector_molora_forward.2} parent=43 // pred_fallthru
          _
      $region44: #{vector_molora_forward.2} parent=5 // pred_fallthru
        _
    $region6: #{vector_molora_forward.2} parent=1 // loop_footer
      %s19 = sadd.s32 1, %s15
    $region7: #{vector_molora_forward.2} parent=1 // loop_footer_branch
      %14 = sbr.rel target = $region3
    $region8: #{vector_molora_forward.2} parent=1 // loop_exit
      _
    %1343 = vsyncpa [#allocation3], 1
    %s1344 = scalar_lea.sflag [#allocation3], 1
    %1345 = vsyncpa %s1344, 1
    %1346 = vsyncpa [#allocation6], 1
    %1347 = vsyncpa [#allocation4], 1
    %s1348 = scalar_lea.sflag [#allocation4], 1
    %1349 = vsyncpa %s1348, 1

</llo_original>
